<compile_context>
chip_gen: v7x
topology: tpu7x:2x2x1
jax: 0.10.0
libtpu: 0.0.40
codegen_flags: <defaults>
</compile_context>

<pallas_src>
import functools
import math

import numpy as np
import jax
import jax.numpy as jnp
from jax.experimental import pallas as pl
from jax.experimental.pallas import tpu as pltpu

# -------- configuration (Prob_Attention(in_channel=4, embed_dim=32,
#                          patch_size=8, num_head=1, cross_layers=1, mlp_ratio=1.0)) --------
IN_CHANNEL = 4
EMBED_DIM = 32
PATCH = 8
NUM_HEADS = 1
CROSS_LAYERS = 1
MLP_RATIO = 1.0
FACTOR = 5
LN_EPS = 1e-5
BN_EPS = 1e-5

# packed row-vector slab layout: 2 temporal-token rows + 14 rows per Block.
_ROWS_PER_BLOCK = 14


# ----------------------------- in-kernel helpers (traced into the fused kernel) -----------

def _layer_norm(x, g, b):
    mu = jnp.mean(x, axis=-1, keepdims=True)
    xc = x - mu
    var = jnp.mean(xc * xc, axis=-1, keepdims=True)
    return xc * jax.lax.rsqrt(var + LN_EPS) * g + b


def _gelu_exact(x):
    # nn.GELU() (erf form).
    # TODO(synk): exact lax.erf may not lower in Mosaic; use Abramowitz–Stegun 7.1.26
    # (|err| < 1.5e-7, float32-level) built only from exp/mul/add/where.
    z = x * 0.7071067811865476
    az = jnp.abs(z)
    t = 1.0 / (1.0 + 0.3275911 * az)
    poly = t * (0.254829592 + t * (-0.284496736 + t * (1.421413741 +
                t * (-1.453152027 + t * 1.061405429))))
    erf_abs = 1.0 - poly * jnp.exp(-az * az)
    erf_z = jnp.where(z >= 0.0, erf_abs, -erf_abs)
    return 0.5 * x * (1.0 + erf_z)


# ----------------------------- the single fused Pallas kernel -----------------------------

def _fused_forward_kernel(*refs, num_blocks, b_half, d_head):
    """Whole Prob_Attention forward on one VMEM-resident token slab.

    refs = [patches, embed_w, attn_bias, vecs,
            (wqkv, wo, w1, w2) * num_blocks,
            wf_t, m_big, resid, out]
    """
    out_ref = refs[-1]
    it = iter(refs[:-1])
    nxt = lambda: next(it)[...]

    patches = nxt()                    # (R, C*ps*ps)
    embed_w = nxt()                    # (C*ps*ps, E)
    attn_bias = nxt()                  # (R, R)  0 / -1e30 per-image block-diagonal mask
    vecs = nxt()                       # (2 + 14*num_blocks, vec_w) packed row vectors

    R = patches.shape[0]
    E = embed_w.shape[1]
    scale = 1.0 / math.sqrt(d_head)

    def vrow(i, w):                    # one packed (1, w) parameter row (static slice)
        return vecs[i:i + 1, :w]

    # PatchEmbed (Conv2d k=ps s=ps, bias=False, as a patch matmul) + time tokens.
    x = jnp.dot(patches, embed_w, preferred_element_type=jnp.float32)
    row_id = jax.lax.broadcasted_iota(jnp.int32, (R, E), 0)
    tt_b = jnp.broadcast_to(vrow(0, E), (R, E))
    tt_a = jnp.broadcast_to(vrow(1, E), (R, E))
    x = x + jnp.where(row_id < b_half, tt_b, tt_a)

    base = 2
    for _ in range(num_blocks):
        wqkv = nxt()                   # (E, 3E)  WQ|WK|WV concatenated in the wrapper
        wo = nxt()                     # (E, E)
        w1 = nxt()                     # (E, hidden)
        w2 = nxt()                     # (hidden, E)
        hidden = w1.shape[1]

        n1_g, n1_b = vrow(base + 0, E), vrow(base + 1, E)
        bq, bk, bv = vrow(base + 2, E), vrow(base + 3, E), vrow(base + 4, E)
        bo = vrow(base + 5, E)
        n2_g, n2_b = vrow(base + 6, E), vrow(base + 7, E)
        b1, g1, be1 = vrow(base + 8, hidden), vrow(base + 9, hidden), vrow(base + 10, hidden)
        b2, g2, be2 = vrow(base + 11, E), vrow(base + 12, E), vrow(base + 13, E)
        base += _ROWS_PER_BLOCK

        # Block.norm1 applied to both streams at once (they share the slab).
        xn = _layer_norm(x, n1_g, n1_b)

        # Fused QKV projection.
        qkv = jnp.dot(xn, wqkv, preferred_element_type=jnp.float32)
        q = qkv[:, :E] + bq
        k = qkv[:, E:2 * E] + bk
        v = qkv[:, 2 * E:] + bv

        # Cross attention (the torch Block reuses attn_a_b for BOTH directions):
        # queries for image g come from the partner time step at the same batch
        # index -> rotate Q rows by B*N; keys/values stay local and the additive
        # block-diagonal bias restricts attention to each image's own tokens.
        # (ProbAttention with n_top == L_Q is exactly dense attention.)
        q_x = jnp.concatenate([q[b_half:, :], q[:b_half, :]], axis=0)
        s = jax.lax.dot_general(q_x, k, (((1,), (1,)), ((), ())),
                                preferred_element_type=jnp.float32) * scale + attn_bias
        m = jnp.max(s, axis=-1, keepdims=True)
        p = jnp.exp(s - m)
        attn = p / jnp.sum(p, axis=-1, keepdims=True)
        ctx = jnp.dot(attn, v, preferred_element_type=jnp.float32)
        ctx = jnp.dot(ctx, wo, preferred_element_type=jnp.float32) + bo   # out_projection

        # TODO(synk): Dropout / DropPath are train-time stochastic ops -> identity (eval).
        x2 = _layer_norm(xn + ctx, n2_g, n2_b)                            # Block.norm
        h = _layer_norm(jnp.dot(x2, w1, preferred_element_type=jnp.float32) + b1, g1, be1)
        h = _gelu_exact(h)                                                # Mlp.act (GELU)
        h = _layer_norm(jnp.dot(h, w2, preferred_element_type=jnp.float32) + b2, g2, be2)
        x = x2 + h                                                        # Mlp residual

    # PatchFeature(bilinear=True) + BatchNorm2d(eval) + input residual, fused.
    # 1x1 conv commutes with the bilinear upsample, so convolve the tiny token slab
    # first, then one lane-dense matmul against the block-diagonal upsample matrix.
    wf_t = nxt()                       # (C, E)       conv weight^T, BN scale folded
    m_big = nxt()                      # (R, G*H*W)   block-diag kron(bilinear, bilinear)^T
    resid = nxt()                      # (C, G*H*W)   input residual + conv/BN bias folded

    feat_t = jax.lax.dot_general(wf_t, x, (((1,), (1,)), ((), ())),
                                 preferred_element_type=jnp.float32)      # (C, R)
    up = jnp.dot(feat_t, m_big, preferred_element_type=jnp.float32)       # (C, G*H*W)
    out_ref[...] = up + resid


# ----------------------------- host-side constant builders (hoisted & cached) -------------

def bilinear_matrix(l_in, l_out):
    """Row-interp matrix for nn.Upsample(mode='bilinear', align_corners=True)."""
    src = np.arange(l_out, dtype=np.float64) * (l_in - 1) / max(l_out - 1, 1)
    i0 = np.clip(np.floor(src).astype(np.int64), 0, l_in - 1)
    i1 = np.minimum(i0 + 1, l_in - 1)
    w1 = src - i0
    w0 = 1.0 - w1
    m = np.zeros((l_out, l_in), np.float32)
    m[np.arange(l_out), i0] += w0
    m[np.arange(l_out), i1] += w1
    return m


@functools.lru_cache(maxsize=None)
def _upsample_matrix_T(l, ps, groups):
    """Block-diagonal (per image) transpose of kron(bilinear, bilinear): (G*N, G*S)."""
    m1d = bilinear_matrix(l, l * ps)
    m2d_t = np.kron(m1d, m1d).T.astype(np.float32)             # (N, S)
    return np.kron(np.eye(groups, dtype=np.float32), m2d_t)    # (G*N, G*S)


@functools.lru_cache(maxsize=None)
def _block_diag_bias(rows, n_tok):
    """Additive attention bias: 0 inside an image's own tokens, -1e30 across images."""
    g = np.arange(rows) // n_tok
    return np.where(g[:, None] == g[None, :], 0.0, -1e30).astype(np.float32)


# ----------------------------- forward wrapper -----------------------------

@jax.jit
def prob_attention_forward(params, before, after):
    # layout: before/after are NCHW (B, C, H, W), identical to the PyTorch module.
    B, C, H, W = before.shape
    ps, E, Hh = PATCH, EMBED_DIM, NUM_HEADS
    nh, nw = H // ps, W // ps
    N = nh * nw            # tokens per image
    G = 2 * B              # images in the fused slab (before & after stacked)
    S = H * W
    R = G * N              # total token rows

    # Dense attention == ProbAttention exactly only when every query is kept
    # (n_top == L_Q).  True for this config (N=4, factor=5); guard it explicitly.
    assert min(FACTOR * int(np.ceil(np.log(N))), N) == N, \
        "ProbAttention fast path requires n_top == L_Q"
    assert Hh == 1, "fused cross-attention kernel assumes num_head == 1"
    assert nh == nw and nh * ps == H and nw * ps == W

    def extract_patches(x):            # NCHW -> (B*N, C*ps*ps), row = (b, ih, iw)
        p = x.reshape(B, C, nh, ps, nw, ps).transpose(0, 2, 4, 1, 3, 5)
        return p.reshape(B * N, C * ps * ps)

    patches = jnp.concatenate([extract_patches(before), extract_patches(after)], axis=0)

    # ---- pack every (1, dim) parameter row into one slab -> one DMA instead of ~16 ----
    hidden = int(params['blocks'][0]['mlp']['w1'].shape[1]) if params['blocks'] else E
    vec_w = max(E, hidden)

    def pad_row(v):
        v = v.reshape(-1)
        return jnp.pad(v, (0, vec_w - v.shape[0])) if v.shape[0] < vec_w else v

    vec_rows = [params['time_token_b'], params['time_token_a']]
    mats = []
    for blk in params['blocks']:
        a, m = blk['attn'], blk['mlp']
        mats += [jnp.concatenate([a['wq'], a['wk'], a['wv']], axis=1),    # (E, 3E)
                 a['wo'], m['w1'], m['w2']]
        vec_rows += [blk['n1_g'], blk['n1_b'],
                     a['bq'], a['bk'], a['bv'], a['bo'],
                     blk['n2_g'], blk['n2_b'],
                     m['b1'], m['g1'], m['be1'],
                     m['b2'], m['g2'], m['be2']]
    vecs = jnp.stack([pad_row(v) for v in vec_rows], axis=0)              # (rows, vec_w)

    # PatchFeature 1x1 conv with eval-mode BatchNorm2d folded in.
    bn_scale = params['bn_gamma'] * jax.lax.rsqrt(params['bn_rv'] + BN_EPS)
    bn_shift = params['bn_beta'] - params['bn_rm'] * bn_scale
    wf_t = (params['feat_w'] * bn_scale[None, :]).T                       # (C, E)
    bias_c = (params['feat_b'] * bn_scale + bn_shift).reshape(C, 1)
    m_big = jnp.asarray(_upsample_matrix_T(nh, ps, G))                    # (R, G*S)
    # input residual in lane-dense (C, G*S) layout, with the conv/BN bias pre-folded.
    resid = jnp.stack([before, after], axis=0).transpose(2, 0, 1, 3, 4).reshape(C, G * S)
    resid = resid + bias_c

    inputs = [patches, params['embed_w'], jnp.asarray(_block_diag_bias(R, N)), vecs]
    inputs += mats
    inputs += [wf_t, m_big, resid]

    kern = functools.partial(_fused_forward_kernel,
                             num_blocks=len(params['blocks']),
                             b_half=B * N,
                             d_head=E // Hh)
    vmem = pl.BlockSpec(memory_space=pltpu.MemorySpace.VMEM)
    out = pl.pallas_call(
        kern,
        out_shape=jax.ShapeDtypeStruct((C, G * S), jnp.float32),
        in_specs=[vmem] * len(inputs),
        out_specs=vmem,
    )(*inputs)

    # lane-dense (C, 2*B*H*W) kernel output -> NCHW for both streams (plain-JAX glue).
    out = out.reshape(C, 2, B, H, W).transpose(1, 2, 0, 3, 4)             # (2, B, C, H, W)
    return out[0], out[1], None


# ----------------------------- deterministic parameter init -----------------------------

def _dense(key, fan_in, fan_out, scale=0.05):
    kw, kb = jax.random.split(key)
    return (scale * jax.random.normal(kw, (fan_in, fan_out), jnp.float32),
            scale * jax.random.normal(kb, (fan_out,), jnp.float32))


def _ln(key, dim, scale=0.05):
    kg, kb = jax.random.split(key)
    return (1.0 + scale * jax.random.normal(kg, (dim,), jnp.float32),
            scale * jax.random.normal(kb, (dim,), jnp.float32))


def init_params(key):
    C, E, ps, Hh = IN_CHANNEL, EMBED_DIM, PATCH, NUM_HEADS
    d_head = E // Hh
    hidden = int(E * MLP_RATIO)
    keys = iter(jax.random.split(key, 64))
    p = {}
    p['embed_w'] = 0.05 * jax.random.normal(next(keys), (C * ps * ps, E), jnp.float32)
    p['time_token_b'] = jnp.zeros((1, 1, E), jnp.float32)  # torch inits these to zeros
    p['time_token_a'] = jnp.zeros((1, 1, E), jnp.float32)
    blocks = []
    for _ in range(CROSS_LAYERS):
        blk = {}
        blk['n1_g'], blk['n1_b'] = _ln(next(keys), E)
        blk['n2_g'], blk['n2_b'] = _ln(next(keys), E)
        attn = {}
        attn['wq'], attn['bq'] = _dense(next(keys), E, d_head * Hh)
        attn['wk'], attn['bk'] = _dense(next(keys), E, d_head * Hh)
        attn['wv'], attn['bv'] = _dense(next(keys), E, d_head * Hh)
        attn['wo'], attn['bo'] = _dense(next(keys), d_head * Hh, E)
        blk['attn'] = attn
        m = {}
        m['w1'], m['b1'] = _dense(next(keys), E, hidden)
        m['g1'], m['be1'] = _ln(next(keys), hidden)
        m['w2'], m['b2'] = _dense(next(keys), hidden, E)
        m['g2'], m['be2'] = _ln(next(keys), E)
        blk['mlp'] = m
        blocks.append(blk)
    p['blocks'] = blocks
    p['feat_w'], p['feat_b'] = _dense(next(keys), E, C)    # PatchFeature 1x1 conv (bias=True)
    p['bn_gamma'] = 1.0 + 0.05 * jax.random.normal(next(keys), (C,), jnp.float32)
    p['bn_beta'] = 0.05 * jax.random.normal(next(keys), (C,), jnp.float32)
    p['bn_rm'] = jnp.zeros((C,), jnp.float32)
    p['bn_rv'] = jnp.ones((C,), jnp.float32)
    return p


# ----------------------------- main -----------------------------

if __name__ == "__main__":
    key = jax.random.PRNGKey(0)
    kb, ka, _ = jax.random.split(key, 3)     # third key kept for input reproducibility
    before = jax.random.normal(kb, (2, IN_CHANNEL, 16, 16), jnp.float32)
    after = jax.random.normal(ka, (2, IN_CHANNEL, 16, 16), jnp.float32)
    params = init_params(jax.random.PRNGKey(42))

    out_b, out_a, attn = prob_attention_forward(params, before, after)
    jax.block_until_ready((out_b, out_a))
    assert out_b.shape == before.shape and out_a.shape == after.shape
    assert attn is None
    print("KERNEL_OK")
</pallas_src>

<mosaic_0001>
module attributes {stable_mosaic.version = 11 : i64} {
  func.func @_fused_forward_kernel(%arg0: memref<16x256xf32, #tpu.memory_space<vmem>>, %arg1: memref<256x32xf32, #tpu.memory_space<vmem>>, %arg2: memref<16x16xf32, #tpu.memory_space<vmem>>, %arg3: memref<16x32xf32, #tpu.memory_space<vmem>>, %arg4: memref<32x96xf32, #tpu.memory_space<vmem>>, %arg5: memref<32x32xf32, #tpu.memory_space<vmem>>, %arg6: memref<32x32xf32, #tpu.memory_space<vmem>>, %arg7: memref<32x32xf32, #tpu.memory_space<vmem>>, %arg8: memref<4x32xf32, #tpu.memory_space<vmem>>, %arg9: memref<16x1024xf32, #tpu.memory_space<vmem>>, %arg10: memref<4x1024xf32, #tpu.memory_space<vmem>>, %arg11: memref<4x1024xf32, #tpu.memory_space<vmem>>) attributes {dimension_semantics = [], scalar_prefetch = 0 : i64, scratch_operands = 0 : i64, tpu.core_type = #tpu.core_type<tc>} {
    %c0 = arith.constant 0 : index
    %c0_0 = arith.constant 0 : index
    %0 = vector.load %arg0[%c0, %c0_0] : memref<16x256xf32, #tpu.memory_space<vmem>>, vector<16x256xf32>
    %c0_1 = arith.constant 0 : index
    %c0_2 = arith.constant 0 : index
    %1 = vector.load %arg1[%c0_1, %c0_2] : memref<256x32xf32, #tpu.memory_space<vmem>>, vector<256x32xf32>
    %c0_3 = arith.constant 0 : index
    %c0_4 = arith.constant 0 : index
    %2 = vector.load %arg2[%c0_3, %c0_4] : memref<16x16xf32, #tpu.memory_space<vmem>>, vector<16x16xf32>
    %c0_5 = arith.constant 0 : index
    %c0_6 = arith.constant 0 : index
    %3 = vector.load %arg3[%c0_5, %c0_6] : memref<16x32xf32, #tpu.memory_space<vmem>>, vector<16x32xf32>
    %cst = arith.constant dense<0.000000e+00> : vector<16x32xf32>
    %4 = tpu.matmul %0, %1, %cst {dimension_numbers = #tpu.dot_dimension_numbers<[1], [0], [0], [1], [0, 0, 1, 1], [], []>} : vector<16x256xf32>, vector<256x32xf32>, vector<16x32xf32> -> vector<16x32xf32>
    %5 = tpu.iota {dimensions = array<i32: 0>} : vector<16x32xi32>
    %6 = vector.extract_strided_slice %3 {offsets = [0, 0], sizes = [1, 32], strides = [1, 1]} : vector<16x32xf32> to vector<1x32xf32>
    %7 = vector.shape_cast %6 : vector<1x32xf32> to vector<1x32xf32>
    %8 = vector.broadcast %7 : vector<1x32xf32> to vector<16x32xf32>
    %9 = vector.extract_strided_slice %3 {offsets = [1, 0], sizes = [1, 32], strides = [1, 1]} : vector<16x32xf32> to vector<1x32xf32>
    %10 = vector.shape_cast %9 : vector<1x32xf32> to vector<1x32xf32>
    %11 = vector.broadcast %10 : vector<1x32xf32> to vector<16x32xf32>
    %c8_i32 = arith.constant 8 : i32
    %12 = vector.broadcast %c8_i32 : i32 to vector<16x32xi32>
    %13 = arith.cmpi slt, %5, %12 : vector<16x32xi32>
    %14 = arith.select %13, %8, %11 : vector<16x32xi1>, vector<16x32xf32>
    %15 = arith.addf %4, %14 : vector<16x32xf32>
    %c0_7 = arith.constant 0 : index
    %c0_8 = arith.constant 0 : index
    %16 = vector.load %arg4[%c0_7, %c0_8] : memref<32x96xf32, #tpu.memory_space<vmem>>, vector<32x96xf32>
    %c0_9 = arith.constant 0 : index
    %c0_10 = arith.constant 0 : index
    %17 = vector.load %arg5[%c0_9, %c0_10] : memref<32x32xf32, #tpu.memory_space<vmem>>, vector<32x32xf32>
    %c0_11 = arith.constant 0 : index
    %c0_12 = arith.constant 0 : index
    %18 = vector.load %arg6[%c0_11, %c0_12] : memref<32x32xf32, #tpu.memory_space<vmem>>, vector<32x32xf32>
    %c0_13 = arith.constant 0 : index
    %c0_14 = arith.constant 0 : index
    %19 = vector.load %arg7[%c0_13, %c0_14] : memref<32x32xf32, #tpu.memory_space<vmem>>, vector<32x32xf32>
    %20 = vector.extract_strided_slice %3 {offsets = [2, 0], sizes = [1, 32], strides = [1, 1]} : vector<16x32xf32> to vector<1x32xf32>
    %21 = vector.extract_strided_slice %3 {offsets = [3, 0], sizes = [1, 32], strides = [1, 1]} : vector<16x32xf32> to vector<1x32xf32>
    %22 = vector.extract_strided_slice %3 {offsets = [4, 0], sizes = [1, 32], strides = [1, 1]} : vector<16x32xf32> to vector<1x32xf32>
    %23 = vector.extract_strided_slice %3 {offsets = [5, 0], sizes = [1, 32], strides = [1, 1]} : vector<16x32xf32> to vector<1x32xf32>
    %24 = vector.extract_strided_slice %3 {offsets = [6, 0], sizes = [1, 32], strides = [1, 1]} : vector<16x32xf32> to vector<1x32xf32>
    %25 = vector.extract_strided_slice %3 {offsets = [7, 0], sizes = [1, 32], strides = [1, 1]} : vector<16x32xf32> to vector<1x32xf32>
    %26 = vector.extract_strided_slice %3 {offsets = [8, 0], sizes = [1, 32], strides = [1, 1]} : vector<16x32xf32> to vector<1x32xf32>
    %27 = vector.extract_strided_slice %3 {offsets = [9, 0], sizes = [1, 32], strides = [1, 1]} : vector<16x32xf32> to vector<1x32xf32>
    %28 = vector.extract_strided_slice %3 {offsets = [10, 0], sizes = [1, 32], strides = [1, 1]} : vector<16x32xf32> to vector<1x32xf32>
    %29 = vector.extract_strided_slice %3 {offsets = [11, 0], sizes = [1, 32], strides = [1, 1]} : vector<16x32xf32> to vector<1x32xf32>
    %30 = vector.extract_strided_slice %3 {offsets = [12, 0], sizes = [1, 32], strides = [1, 1]} : vector<16x32xf32> to vector<1x32xf32>
    %31 = vector.extract_strided_slice %3 {offsets = [13, 0], sizes = [1, 32], strides = [1, 1]} : vector<16x32xf32> to vector<1x32xf32>
    %32 = vector.extract_strided_slice %3 {offsets = [14, 0], sizes = [1, 32], strides = [1, 1]} : vector<16x32xf32> to vector<1x32xf32>
    %33 = vector.extract_strided_slice %3 {offsets = [15, 0], sizes = [1, 32], strides = [1, 1]} : vector<16x32xf32> to vector<1x32xf32>
    %cst_15 = arith.constant dense<0.000000e+00> : vector<16xf32>
    %34 = vector.multi_reduction <add>, %15, %cst_15 [1] : vector<16x32xf32> to vector<16xf32>
    %35 = vector.shape_cast %34 : vector<16xf32> to vector<16x1xf32>
    %cst_16 = arith.constant 3.200000e+01 : f32
    %36 = vector.broadcast %cst_16 : f32 to vector<16x1xf32>
    %37 = arith.divf %35, %36 : vector<16x1xf32>
    %38 = vector.broadcast %37 : vector<16x1xf32> to vector<16x32xf32>
    %39 = arith.subf %15, %38 : vector<16x32xf32>
    %40 = arith.mulf %39, %39 : vector<16x32xf32>
    %cst_17 = arith.constant dense<0.000000e+00> : vector<16xf32>
    %41 = vector.multi_reduction <add>, %40, %cst_17 [1] : vector<16x32xf32> to vector<16xf32>
    %42 = vector.shape_cast %41 : vector<16xf32> to vector<16x1xf32>
    %cst_18 = arith.constant 3.200000e+01 : f32
    %43 = vector.broadcast %cst_18 : f32 to vector<16x1xf32>
    %44 = arith.divf %42, %43 : vector<16x1xf32>
    %cst_19 = arith.constant 9.99999974E-6 : f32
    %45 = vector.broadcast %cst_19 : f32 to vector<16x1xf32>
    %46 = arith.addf %44, %45 : vector<16x1xf32>
    %47 = math.rsqrt %46 : vector<16x1xf32>
    %48 = vector.broadcast %47 : vector<16x1xf32> to vector<16x32xf32>
    %49 = arith.mulf %39, %48 : vector<16x32xf32>
    %50 = vector.broadcast %20 : vector<1x32xf32> to vector<16x32xf32>
    %51 = arith.mulf %49, %50 : vector<16x32xf32>
    %52 = vector.broadcast %21 : vector<1x32xf32> to vector<16x32xf32>
    %53 = arith.addf %51, %52 : vector<16x32xf32>
    %cst_20 = arith.constant dense<0.000000e+00> : vector<16x96xf32>
    %54 = tpu.matmul %53, %16, %cst_20 {dimension_numbers = #tpu.dot_dimension_numbers<[1], [0], [0], [1], [0, 0, 1, 1], [], []>} : vector<16x32xf32>, vector<32x96xf32>, vector<16x96xf32> -> vector<16x96xf32>
    %55 = vector.extract_strided_slice %54 {offsets = [0, 0], sizes = [16, 32], strides = [1, 1]} : vector<16x96xf32> to vector<16x32xf32>
    %56 = vector.broadcast %22 : vector<1x32xf32> to vector<16x32xf32>
    %57 = arith.addf %55, %56 : vector<16x32xf32>
    %58 = vector.extract_strided_slice %54 {offsets = [0, 32], sizes = [16, 32], strides = [1, 1]} : vector<16x96xf32> to vector<16x32xf32>
    %59 = vector.broadcast %23 : vector<1x32xf32> to vector<16x32xf32>
    %60 = arith.addf %58, %59 : vector<16x32xf32>
    %61 = vector.extract_strided_slice %54 {offsets = [0, 64], sizes = [16, 32], strides = [1, 1]} : vector<16x96xf32> to vector<16x32xf32>
    %62 = vector.broadcast %24 : vector<1x32xf32> to vector<16x32xf32>
    %63 = arith.addf %61, %62 : vector<16x32xf32>
    %64 = vector.extract_strided_slice %57 {offsets = [8, 0], sizes = [8, 32], strides = [1, 1]} : vector<16x32xf32> to vector<8x32xf32>
    %65 = vector.extract_strided_slice %57 {offsets = [0, 0], sizes = [8, 32], strides = [1, 1]} : vector<16x32xf32> to vector<8x32xf32>
    %66 = tpu.concatenate %64, %65 in 0 : vector<8x32xf32>, vector<8x32xf32> -> vector<16x32xf32>
    %cst_21 = arith.constant dense<0.000000e+00> : vector<16x16xf32>
    %67 = tpu.matmul %66, %60, %cst_21 {dimension_numbers = #tpu.dot_dimension_numbers<[1], [1], [0], [0], [0, 0, 1, 0], [], []>} : vector<16x32xf32>, vector<16x32xf32>, vector<16x16xf32> -> vector<16x16xf32>
    %cst_22 = arith.constant 0.176776692 : f32
    %68 = vector.broadcast %cst_22 : f32 to vector<16x16xf32>
    %69 = arith.mulf %67, %68 : vector<16x16xf32>
    %70 = arith.addf %69, %2 : vector<16x16xf32>
    %cst_23 = arith.constant dense<0xFF800000> : vector<16xf32>
    %71 = vector.multi_reduction <maximumf>, %70, %cst_23 [1] : vector<16x16xf32> to vector<16xf32>
    %72 = vector.shape_cast %71 : vector<16xf32> to vector<16x1xf32>
    %73 = vector.broadcast %72 : vector<16x1xf32> to vector<16x16xf32>
    %74 = arith.subf %70, %73 : vector<16x16xf32>
    %75 = math.exp %74 : vector<16x16xf32>
    %cst_24 = arith.constant dense<0.000000e+00> : vector<16xf32>
    %76 = vector.multi_reduction <add>, %75, %cst_24 [1] : vector<16x16xf32> to vector<16xf32>
    %77 = vector.shape_cast %76 : vector<16xf32> to vector<16x1xf32>
    %78 = vector.broadcast %77 : vector<16x1xf32> to vector<16x16xf32>
    %79 = arith.divf %75, %78 : vector<16x16xf32>
    %cst_25 = arith.constant dense<0.000000e+00> : vector<16x32xf32>
    %80 = tpu.matmul %79, %63, %cst_25 {dimension_numbers = #tpu.dot_dimension_numbers<[1], [0], [0], [1], [0, 0, 1, 1], [], []>} : vector<16x16xf32>, vector<16x32xf32>, vector<16x32xf32> -> vector<16x32xf32>
    %cst_26 = arith.constant dense<0.000000e+00> : vector<16x32xf32>
    %81 = tpu.matmul %80, %17, %cst_26 {dimension_numbers = #tpu.dot_dimension_numbers<[1], [0], [0], [1], [0, 0, 1, 1], [], []>} : vector<16x32xf32>, vector<32x32xf32>, vector<16x32xf32> -> vector<16x32xf32>
    %82 = vector.broadcast %25 : vector<1x32xf32> to vector<16x32xf32>
    %83 = arith.addf %81, %82 : vector<16x32xf32>
    %84 = arith.addf %53, %83 : vector<16x32xf32>
    %cst_27 = arith.constant dense<0.000000e+00> : vector<16xf32>
    %85 = vector.multi_reduction <add>, %84, %cst_27 [1] : vector<16x32xf32> to vector<16xf32>
    %86 = vector.shape_cast %85 : vector<16xf32> to vector<16x1xf32>
    %cst_28 = arith.constant 3.200000e+01 : f32
    %87 = vector.broadcast %cst_28 : f32 to vector<16x1xf32>
    %88 = arith.divf %86, %87 : vector<16x1xf32>
    %89 = vector.broadcast %88 : vector<16x1xf32> to vector<16x32xf32>
    %90 = arith.subf %84, %89 : vector<16x32xf32>
    %91 = arith.mulf %90, %90 : vector<16x32xf32>
    %cst_29 = arith.constant dense<0.000000e+00> : vector<16xf32>
    %92 = vector.multi_reduction <add>, %91, %cst_29 [1] : vector<16x32xf32> to vector<16xf32>
    %93 = vector.shape_cast %92 : vector<16xf32> to vector<16x1xf32>
    %cst_30 = arith.constant 3.200000e+01 : f32
    %94 = vector.broadcast %cst_30 : f32 to vector<16x1xf32>
    %95 = arith.divf %93, %94 : vector<16x1xf32>
    %cst_31 = arith.constant 9.99999974E-6 : f32
    %96 = vector.broadcast %cst_31 : f32 to vector<16x1xf32>
    %97 = arith.addf %95, %96 : vector<16x1xf32>
    %98 = math.rsqrt %97 : vector<16x1xf32>
    %99 = vector.broadcast %98 : vector<16x1xf32> to vector<16x32xf32>
    %100 = arith.mulf %90, %99 : vector<16x32xf32>
    %101 = vector.broadcast %26 : vector<1x32xf32> to vector<16x32xf32>
    %102 = arith.mulf %100, %101 : vector<16x32xf32>
    %103 = vector.broadcast %27 : vector<1x32xf32> to vector<16x32xf32>
    %104 = arith.addf %102, %103 : vector<16x32xf32>
    %cst_32 = arith.constant dense<0.000000e+00> : vector<16x32xf32>
    %105 = tpu.matmul %104, %18, %cst_32 {dimension_numbers = #tpu.dot_dimension_numbers<[1], [0], [0], [1], [0, 0, 1, 1], [], []>} : vector<16x32xf32>, vector<32x32xf32>, vector<16x32xf32> -> vector<16x32xf32>
    %106 = vector.broadcast %28 : vector<1x32xf32> to vector<16x32xf32>
    %107 = arith.addf %105, %106 : vector<16x32xf32>
    %cst_33 = arith.constant dense<0.000000e+00> : vector<16xf32>
    %108 = vector.multi_reduction <add>, %107, %cst_33 [1] : vector<16x32xf32> to vector<16xf32>
    %109 = vector.shape_cast %108 : vector<16xf32> to vector<16x1xf32>
    %cst_34 = arith.constant 3.200000e+01 : f32
    %110 = vector.broadcast %cst_34 : f32 to vector<16x1xf32>
    %111 = arith.divf %109, %110 : vector<16x1xf32>
    %112 = vector.broadcast %111 : vector<16x1xf32> to vector<16x32xf32>
    %113 = arith.subf %107, %112 : vector<16x32xf32>
    %114 = arith.mulf %113, %113 : vector<16x32xf32>
    %cst_35 = arith.constant dense<0.000000e+00> : vector<16xf32>
    %115 = vector.multi_reduction <add>, %114, %cst_35 [1] : vector<16x32xf32> to vector<16xf32>
    %116 = vector.shape_cast %115 : vector<16xf32> to vector<16x1xf32>
    %cst_36 = arith.constant 3.200000e+01 : f32
    %117 = vector.broadcast %cst_36 : f32 to vector<16x1xf32>
    %118 = arith.divf %116, %117 : vector<16x1xf32>
    %cst_37 = arith.constant 9.99999974E-6 : f32
    %119 = vector.broadcast %cst_37 : f32 to vector<16x1xf32>
    %120 = arith.addf %118, %119 : vector<16x1xf32>
    %121 = math.rsqrt %120 : vector<16x1xf32>
    %122 = vector.broadcast %121 : vector<16x1xf32> to vector<16x32xf32>
    %123 = arith.mulf %113, %122 : vector<16x32xf32>
    %124 = vector.broadcast %29 : vector<1x32xf32> to vector<16x32xf32>
    %125 = arith.mulf %123, %124 : vector<16x32xf32>
    %126 = vector.broadcast %30 : vector<1x32xf32> to vector<16x32xf32>
    %127 = arith.addf %125, %126 : vector<16x32xf32>
    %cst_38 = arith.constant 0.707106769 : f32
    %128 = vector.broadcast %cst_38 : f32 to vector<16x32xf32>
    %129 = arith.mulf %127, %128 : vector<16x32xf32>
    %130 = math.absf %129 : vector<16x32xf32>
    %cst_39 = arith.constant 0.327591091 : f32
    %131 = vector.broadcast %cst_39 : f32 to vector<16x32xf32>
    %132 = arith.mulf %131, %130 : vector<16x32xf32>
    %cst_40 = arith.constant 1.000000e+00 : f32
    %133 = vector.broadcast %cst_40 : f32 to vector<16x32xf32>
    %134 = arith.addf %133, %132 : vector<16x32xf32>
    %cst_41 = arith.constant 1.000000e+00 : f32
    %135 = vector.broadcast %cst_41 : f32 to vector<16x32xf32>
    %136 = arith.divf %135, %134 : vector<16x32xf32>
    %cst_42 = arith.constant 1.06140542 : f32
    %137 = vector.broadcast %cst_42 : f32 to vector<16x32xf32>
    %138 = arith.mulf %136, %137 : vector<16x32xf32>
    %cst_43 = arith.constant -1.45315206 : f32
    %139 = vector.broadcast %cst_43 : f32 to vector<16x32xf32>
    %140 = arith.addf %139, %138 : vector<16x32xf32>
    %141 = arith.mulf %136, %140 : vector<16x32xf32>
    %cst_44 = arith.constant 1.42141378 : f32
    %142 = vector.broadcast %cst_44 : f32 to vector<16x32xf32>
    %143 = arith.addf %142, %141 : vector<16x32xf32>
    %144 = arith.mulf %136, %143 : vector<16x32xf32>
    %cst_45 = arith.constant -0.284496725 : f32
    %145 = vector.broadcast %cst_45 : f32 to vector<16x32xf32>
    %146 = arith.addf %145, %144 : vector<16x32xf32>
    %147 = arith.mulf %136, %146 : vector<16x32xf32>
    %cst_46 = arith.constant 0.254829586 : f32
    %148 = vector.broadcast %cst_46 : f32 to vector<16x32xf32>
    %149 = arith.addf %148, %147 : vector<16x32xf32>
    %150 = arith.mulf %136, %149 : vector<16x32xf32>
    %cst_47 = arith.constant 0.000000e+00 : f32
    %151 = vector.broadcast %cst_47 : f32 to vector<16x32xf32>
    %152 = arith.subf %151, %130 : vector<16x32xf32>
    %153 = arith.mulf %152, %130 : vector<16x32xf32>
    %154 = math.exp %153 : vector<16x32xf32>
    %155 = arith.mulf %150, %154 : vector<16x32xf32>
    %cst_48 = arith.constant 1.000000e+00 : f32
    %156 = vector.broadcast %cst_48 : f32 to vector<16x32xf32>
    %157 = arith.subf %156, %155 : vector<16x32xf32>
    %cst_49 = arith.constant 0.000000e+00 : f32
    %158 = vector.broadcast %cst_49 : f32 to vector<16x32xf32>
    %159 = arith.cmpf oge, %129, %158 : vector<16x32xf32>
    %cst_50 = arith.constant 0.000000e+00 : f32
    %160 = vector.broadcast %cst_50 : f32 to vector<16x32xf32>
    %161 = arith.subf %160, %157 : vector<16x32xf32>
    %162 = arith.select %159, %157, %161 : vector<16x32xi1>, vector<16x32xf32>
    %cst_51 = arith.constant 5.000000e-01 : f32
    %163 = vector.broadcast %cst_51 : f32 to vector<16x32xf32>
    %164 = arith.mulf %163, %127 : vector<16x32xf32>
    %cst_52 = arith.constant 1.000000e+00 : f32
    %165 = vector.broadcast %cst_52 : f32 to vector<16x32xf32>
    %166 = arith.addf %165, %162 : vector<16x32xf32>
    %167 = arith.mulf %164, %166 : vector<16x32xf32>
    %cst_53 = arith.constant dense<0.000000e+00> : vector<16x32xf32>
    %168 = tpu.matmul %167, %19, %cst_53 {dimension_numbers = #tpu.dot_dimension_numbers<[1], [0], [0], [1], [0, 0, 1, 1], [], []>} : vector<16x32xf32>, vector<32x32xf32>, vector<16x32xf32> -> vector<16x32xf32>
    %169 = vector.broadcast %31 : vector<1x32xf32> to vector<16x32xf32>
    %170 = arith.addf %168, %169 : vector<16x32xf32>
    %cst_54 = arith.constant dense<0.000000e+00> : vector<16xf32>
    %171 = vector.multi_reduction <add>, %170, %cst_54 [1] : vector<16x32xf32> to vector<16xf32>
    %172 = vector.shape_cast %171 : vector<16xf32> to vector<16x1xf32>
    %cst_55 = arith.constant 3.200000e+01 : f32
    %173 = vector.broadcast %cst_55 : f32 to vector<16x1xf32>
    %174 = arith.divf %172, %173 : vector<16x1xf32>
    %175 = vector.broadcast %174 : vector<16x1xf32> to vector<16x32xf32>
    %176 = arith.subf %170, %175 : vector<16x32xf32>
    %177 = arith.mulf %176, %176 : vector<16x32xf32>
    %cst_56 = arith.constant dense<0.000000e+00> : vector<16xf32>
    %178 = vector.multi_reduction <add>, %177, %cst_56 [1] : vector<16x32xf32> to vector<16xf32>
    %179 = vector.shape_cast %178 : vector<16xf32> to vector<16x1xf32>
    %cst_57 = arith.constant 3.200000e+01 : f32
    %180 = vector.broadcast %cst_57 : f32 to vector<16x1xf32>
    %181 = arith.divf %179, %180 : vector<16x1xf32>
    %cst_58 = arith.constant 9.99999974E-6 : f32
    %182 = vector.broadcast %cst_58 : f32 to vector<16x1xf32>
    %183 = arith.addf %181, %182 : vector<16x1xf32>
    %184 = math.rsqrt %183 : vector<16x1xf32>
    %185 = vector.broadcast %184 : vector<16x1xf32> to vector<16x32xf32>
    %186 = arith.mulf %176, %185 : vector<16x32xf32>
    %187 = vector.broadcast %32 : vector<1x32xf32> to vector<16x32xf32>
    %188 = arith.mulf %186, %187 : vector<16x32xf32>
    %189 = vector.broadcast %33 : vector<1x32xf32> to vector<16x32xf32>
    %190 = arith.addf %188, %189 : vector<16x32xf32>
    %191 = arith.addf %104, %190 : vector<16x32xf32>
    %c0_59 = arith.constant 0 : index
    %c0_60 = arith.constant 0 : index
    %192 = vector.load %arg8[%c0_59, %c0_60] : memref<4x32xf32, #tpu.memory_space<vmem>>, vector<4x32xf32>
    %c0_61 = arith.constant 0 : index
    %c0_62 = arith.constant 0 : index
    %193 = vector.load %arg9[%c0_61, %c0_62] : memref<16x1024xf32, #tpu.memory_space<vmem>>, vector<16x1024xf32>
    %c0_63 = arith.constant 0 : index
    %c0_64 = arith.constant 0 : index
    %194 = vector.load %arg10[%c0_63, %c0_64] : memref<4x1024xf32, #tpu.memory_space<vmem>>, vector<4x1024xf32>
    %cst_65 = arith.constant dense<0.000000e+00> : vector<4x16xf32>
    %195 = tpu.matmul %192, %191, %cst_65 {dimension_numbers = #tpu.dot_dimension_numbers<[1], [1], [0], [0], [0, 0, 1, 0], [], []>} : vector<4x32xf32>, vector<16x32xf32>, vector<4x16xf32> -> vector<4x16xf32>
    %cst_66 = arith.constant dense<0.000000e+00> : vector<4x1024xf32>
    %196 = tpu.matmul %195, %193, %cst_66 {dimension_numbers = #tpu.dot_dimension_numbers<[1], [0], [0], [1], [0, 0, 1, 1], [], []>} : vector<4x16xf32>, vector<16x1024xf32>, vector<4x1024xf32> -> vector<4x1024xf32>
    %197 = arith.addf %196, %194 : vector<4x1024xf32>
    %c0_67 = arith.constant 0 : index
    %c0_68 = arith.constant 0 : index
    %198 = vector.load %arg11[%c0_67, %c0_68] : memref<4x1024xf32, #tpu.memory_space<vmem>>, vector<4x1024xf32>
    tpu.vector_store %arg11[%c0_67, %c0_68], %197 {strides = array<i32>} : memref<4x1024xf32, #tpu.memory_space<vmem>>, vector<4x1024xf32>,
    return
  }
}

</mosaic_0001>

<llo_original>
// kernel: prob_attention_forward.1
$region0: #{prob_attention_forward.1}
  #allocation0 [shape = 'u32[]', space=smem, size = 0x4, offset = 0x4, fixed_abs, tag = 'smem constant byte address 0x4 - core index']
  #allocation1 [shape = 'u32[144,128]{1,0:T(1,128)}', space=vmem, size = 0x12000, scoped, tag = 'internal scratch']
  %s0 = inlined_call_operand.vmem [shape: f32[16,256], index: 0, kind: input, shape index: {}]
  %s1 = inlined_call_operand.vmem [shape: f32[256,32], index: 1, kind: input, shape index: {}]
  %s2 = inlined_call_operand.vmem [shape: f32[16,16], index: 2, kind: input, shape index: {}]
  %s3 = inlined_call_operand.vmem [shape: f32[16,32], index: 3, kind: input, shape index: {}]
  %s4 = inlined_call_operand.vmem [shape: f32[32,96], index: 4, kind: input, shape index: {}]
  %s5 = inlined_call_operand.vmem [shape: f32[32,32], index: 5, kind: input, shape index: {}]
  %s6 = inlined_call_operand.vmem [shape: f32[32,32], index: 6, kind: input, shape index: {}]
  %s7 = inlined_call_operand.vmem [shape: f32[32,32], index: 7, kind: input, shape index: {}]
  %s8 = inlined_call_operand.vmem [shape: f32[4,32], index: 8, kind: input, shape index: {}]
  %s9 = inlined_call_operand.vmem [shape: f32[16,1024], index: 9, kind: input, shape index: {}]
  %s10 = inlined_call_operand.vmem [shape: f32[4,1024], index: 10, kind: input, shape index: {}]
  %s11 = inlined_call_operand.vmem [shape: f32[4,1024], index: 11, kind: output, shape index: {}]
  %s12 = sld [smem:[#allocation0]]
  $region54: #{prob_attention_forward.1} parent=0
    _
  %s14 = ssub.s32 1, %s12
  %s15 = scalar_select 0, %s14, %s12
  // Predicated region
  $region2: #{prob_attention_forward.1} parent=0 // pred_check
    _
  $region3: #{prob_attention_forward.1} parent=0 // pred_check_branch
    %17 = sbr.rel (0) target = $region5
  $region4: #{prob_attention_forward.1} parent=0 // pred_region
    _
  $region5: #{prob_attention_forward.1} parent=0 // pred_fallthru
    _
  // Predicated region
  $region6: #{prob_attention_forward.1} parent=0 // pred_check
    _
  $region7: #{prob_attention_forward.1} parent=0 // pred_check_branch
    %19 = sbr.rel (0) target = $region9
  $region8: #{prob_attention_forward.1} parent=0 // pred_region
    _
  $region9: #{prob_attention_forward.1} parent=0 // pred_fallthru
    _
  // Predicated region
  $region10: #{prob_attention_forward.1} parent=0 // pred_check
    _
  $region11: #{prob_attention_forward.1} parent=0 // pred_check_branch
    %21 = sbr.rel (0) target = $region13
  $region12: #{prob_attention_forward.1} parent=0 // pred_region
    _
  $region13: #{prob_attention_forward.1} parent=0 // pred_fallthru
    _
  // Predicated region
  $region14: #{prob_attention_forward.1} parent=0 // pred_check
    _
  $region15: #{prob_attention_forward.1} parent=0 // pred_check_branch
    %23 = sbr.rel (0) target = $region17
  $region16: #{prob_attention_forward.1} parent=0 // pred_region
    _
  $region17: #{prob_attention_forward.1} parent=0 // pred_fallthru
    _
  // Predicated region
  $region18: #{prob_attention_forward.1} parent=0 // pred_check
    _
  $region19: #{prob_attention_forward.1} parent=0 // pred_check_branch
    %25 = sbr.rel (0) target = $region21
  $region20: #{prob_attention_forward.1} parent=0 // pred_region
    _
  $region21: #{prob_attention_forward.1} parent=0 // pred_fallthru
    _
  // Predicated region
  $region22: #{prob_attention_forward.1} parent=0 // pred_check
    _
  $region23: #{prob_attention_forward.1} parent=0 // pred_check_branch
    %27 = sbr.rel (0) target = $region25
  $region24: #{prob_attention_forward.1} parent=0 // pred_region
    _
  $region25: #{prob_attention_forward.1} parent=0 // pred_fallthru
    _
  // Predicated region
  $region26: #{prob_attention_forward.1} parent=0 // pred_check
    _
  $region27: #{prob_attention_forward.1} parent=0 // pred_check_branch
    %29 = sbr.rel (0) target = $region29
  $region28: #{prob_attention_forward.1} parent=0 // pred_region
    _
  $region29: #{prob_attention_forward.1} parent=0 // pred_fallthru
    _
  // Predicated region
  $region30: #{prob_attention_forward.1} parent=0 // pred_check
    _
  $region31: #{prob_attention_forward.1} parent=0 // pred_check_branch
    %31 = sbr.rel (0) target = $region33
  $region32: #{prob_attention_forward.1} parent=0 // pred_region
    _
  $region33: #{prob_attention_forward.1} parent=0 // pred_fallthru
    _
  // Predicated region
  $region34: #{prob_attention_forward.1} parent=0 // pred_check
    _
  $region35: #{prob_attention_forward.1} parent=0 // pred_check_branch
    %33 = sbr.rel (0) target = $region37
  $region36: #{prob_attention_forward.1} parent=0 // pred_region
    _
  $region37: #{prob_attention_forward.1} parent=0 // pred_fallthru
    _
  // Predicated region
  $region38: #{prob_attention_forward.1} parent=0 // pred_check
    _
  $region39: #{prob_attention_forward.1} parent=0 // pred_check_branch
    %35 = sbr.rel (0) target = $region41
  $region40: #{prob_attention_forward.1} parent=0 // pred_region
    _
  $region41: #{prob_attention_forward.1} parent=0 // pred_fallthru
    _
  // Predicated region
  $region42: #{prob_attention_forward.1} parent=0 // pred_check
    _
  $region43: #{prob_attention_forward.1} parent=0 // pred_check_branch
    %37 = sbr.rel (0) target = $region45
  $region44: #{prob_attention_forward.1} parent=0 // pred_region
    _
  $region45: #{prob_attention_forward.1} parent=0 // pred_fallthru
    _
  %v38 = vld [vmem:[%s0] sm:$0xff]
  %v39 = vld [vmem:[%s0 + $0x8] sm:$0xff]
  %v40 = vld [vmem:[%s0 + $0x10] sm:$0xff]
  %v41 = vld [vmem:[%s0 + $0x18] sm:$0xff]
  %v42 = vld [vmem:[%s1] sm:$0xff]
  %v43 = vld [vmem:[%s1 + $0x8] sm:$0xff]
  %v44 = vld [vmem:[%s1 + $0x10] sm:$0xff]
  %v45 = vld [vmem:[%s1 + $0x18] sm:$0xff]
  %v46 = vld [vmem:[%s1 + $0x20] sm:$0xff]
  %v47 = vld [vmem:[%s1 + $0x28] sm:$0xff]
  %v48 = vld [vmem:[%s1 + $0x30] sm:$0xff]
  %v49 = vld [vmem:[%s1 + $0x38] sm:$0xff]
  %v50 = vld [vmem:[%s1 + $0x40] sm:$0xff]
  %v51 = vld [vmem:[%s1 + $0x48] sm:$0xff]
  %v52 = vld [vmem:[%s1 + $0x50] sm:$0xff]
  %v53 = vld [vmem:[%s1 + $0x58] sm:$0xff]
  %v54 = vld [vmem:[%s1 + $0x60] sm:$0xff]
  %v55 = vld [vmem:[%s1 + $0x68] sm:$0xff]
  %v56 = vld [vmem:[%s1 + $0x70] sm:$0xff]
  %v57 = vld [vmem:[%s1 + $0x78] sm:$0xff]
  %v58 = vld [vmem:[%s1 + $0x80] sm:$0xff]
  %v59 = vld [vmem:[%s1 + $0x88] sm:$0xff]
  %v60 = vld [vmem:[%s1 + $0x90] sm:$0xff]
  %v61 = vld [vmem:[%s1 + $0x98] sm:$0xff]
  %v62 = vld [vmem:[%s1 + $0xa0] sm:$0xff]
  %v63 = vld [vmem:[%s1 + $0xa8] sm:$0xff]
  %v64 = vld [vmem:[%s1 + $0xb0] sm:$0xff]
  %v65 = vld [vmem:[%s1 + $0xb8] sm:$0xff]
  %v66 = vld [vmem:[%s1 + $0xc0] sm:$0xff]
  %v67 = vld [vmem:[%s1 + $0xc8] sm:$0xff]
  %v68 = vld [vmem:[%s1 + $0xd0] sm:$0xff]
  %v69 = vld [vmem:[%s1 + $0xd8] sm:$0xff]
  %v70 = vld [vmem:[%s1 + $0xe0] sm:$0xff]
  %v71 = vld [vmem:[%s1 + $0xe8] sm:$0xff]
  %v72 = vld [vmem:[%s1 + $0xf0] sm:$0xff]
  %v73 = vld [vmem:[%s1 + $0xf8] sm:$0xff]
  %v74 = vld [vmem:[%s2] sm:$0xff]
  %v75 = vld [vmem:[%s2 + $0x8] sm:$0xff]
  %v76 = vld [vmem:[%s3] sm:$0xff]
  %v77 = vld [vmem:[%s3 + $0x8] sm:$0xff]
  %v78 = vlaneseq
  %v79 = vshrl.u32 %v78, 7
  %v80 = vadd.s32 %v79, 8
  %v81 = vlaneseq
  %v82 = vshrl.u32 %v81, 7
  %v83 = vsub.s32 0, %v82
  %v84 = vrot.slane %v76, %v83
  %v85 = vlaneseq
  %v86 = vshrl.u32 %v85, 7
  %v87 = vsub.s32 1, %v86
  %v88 = vrot.slane %v76, %v87
  %vm89 = vcmp.lt.s32.totalorder %v79, 8
  %vm90 = vcmp.lt.s32.totalorder %v80, 8
  %v91 = vsel %vm89, %v84, %v88
  %v92 = vsel %vm90, %v84, %v88
  %93 = vmatprep.subr.mxu0 0.0
  %94 = vmatpush1.msra.mxu0 %v42
  %95 = vmatprep.subr.mxu0 0.0
  %96 = vmatpush1.msra.mxu0 %v43
  %97 = vmatprep.subr.mxu0 0.0
  %98 = vmatpush1.msra.mxu0 %v44
  %99 = vmatprep.subr.mxu0 0.0
  %100 = vmatpush1.msra.mxu0 %v45
  %101 = vmatprep.subr.mxu0 0.0
  %102 = vmatpush1.msra.mxu0 %v46
  %103 = vmatprep.subr.mxu0 0.0
  %104 = vmatpush1.msra.mxu0 %v47
  %105 = vmatprep.subr.mxu0 0.0
  %106 = vmatpush1.msra.mxu0 %v48
  %107 = vmatprep.subr.mxu0 0.0
  %108 = vmatpush1.msra.mxu0 %v49
  %109 = vmatprep.subr.mxu0 0.0
  %110 = vmatpush1.msra.mxu0 %v50
  %111 = vmatprep.subr.mxu0 0.0
  %112 = vmatpush1.msra.mxu0 %v51
  %113 = vmatprep.subr.mxu0 0.0
  %114 = vmatpush1.msra.mxu0 %v52
  %115 = vmatprep.subr.mxu0 0.0
  %116 = vmatpush1.msra.mxu0 %v53
  %117 = vmatprep.subr.mxu0 0.0
  %118 = vmatpush1.msra.mxu0 %v54
  %119 = vmatprep.subr.mxu0 0.0
  %120 = vmatpush1.msra.mxu0 %v55
  %121 = vmatprep.subr.mxu0 0.0
  %122 = vmatpush1.msra.mxu0 %v56
  %123 = vmatprep.subr.mxu0 0.0
  %124 = vmatpush1.msra.mxu0 %v57
  %125 = vmatprep.subr.mxu0 0.0
  %126 = vmatpush1.msra.mxu0 %v58
  %127 = vmatprep.subr.mxu0 0.0
  %128 = vmatpush1.msra.mxu0 %v59
  %129 = vmatprep.subr.mxu0 0.0
  %130 = vmatpush1.msra.mxu0 %v60
  %131 = vmatprep.subr.mxu0 0.0
  %132 = vmatpush1.msra.mxu0 %v61
  %133 = vmatprep.subr.mxu0 0.0
  %134 = vmatpush1.msra.mxu0 %v62
  %135 = vmatprep.subr.mxu0 0.0
  %136 = vmatpush1.msra.mxu0 %v63
  %137 = vmatprep.subr.mxu0 0.0
  %138 = vmatpush1.msra.mxu0 %v64
  %139 = vmatprep.subr.mxu0 0.0
  %140 = vmatpush1.msra.mxu0 %v65
  %141 = vmatprep.subr.mxu0 0.0
  %142 = vmatpush1.msra.mxu0 %v66
  %143 = vmatprep.subr.mxu0 0.0
  %144 = vmatpush1.msra.mxu0 %v67
  %145 = vmatprep.subr.mxu0 0.0
  %146 = vmatpush1.msra.mxu0 %v68
  %147 = vmatprep.subr.mxu0 0.0
  %148 = vmatpush1.msra.mxu0 %v69
  %149 = vmatprep.subr.mxu0 0.0
  %150 = vmatpush1.msra.mxu0 %v70
  %151 = vmatprep.subr.mxu0 0.0
  %152 = vmatpush1.msra.mxu0 %v71
  %153 = vmatprep.subr.mxu0 0.0
  %154 = vmatpush1.msra.mxu0 %v72
  %155 = vmatprep.subr.mxu0 0.0
  %156 = vmatpush1.msra.mxu0 %v73
  %157 = vmatprep.mubr.f32.mxu0 %v39
  %158 = vmatmul.mubr.f32.gmra.mrb[0].mxu0 %v38
  %v159 = vpop.f32.mrb[0].mxu0
  %v160 = vadd.f32 %v91, %v159
  %v161 = vpop.f32.mrb[0].mxu0
  %162 = vmatprep.mubr.f32.mxu0 %v41
  %163 = vmatmul.mubr.f32.gmra.mrb[0].mxu0 %v40
  %v164 = vpop.f32.mrb[0].mxu0
  %v165 = vadd.f32 %v92, %v164
  %v166 = vpop.f32.mrb[0].mxu0
  %167 = vdwg.mxu0
  %v168 = vld [vmem:[%s4] sm:$0xff]
  %v169 = vld [vmem:[%s4 + $0x8] sm:$0xff]
  %v170 = vld [vmem:[%s4 + $0x10] sm:$0xff]
  %v171 = vld [vmem:[%s4 + $0x18] sm:$0xff]
  %v172 = vld [vmem:[%s5] sm:$0xff]
  %v173 = vld [vmem:[%s5 + $0x8] sm:$0xff]
  %v174 = vld [vmem:[%s5 + $0x10] sm:$0xff]
  %v175 = vld [vmem:[%s5 + $0x18] sm:$0xff]
  %v176 = vld [vmem:[%s6] sm:$0xff]
  %v177 = vld [vmem:[%s6 + $0x8] sm:$0xff]
  %v178 = vld [vmem:[%s6 + $0x10] sm:$0xff]
  %v179 = vld [vmem:[%s6 + $0x18] sm:$0xff]
  %v180 = vld [vmem:[%s7] sm:$0xff]
  %v181 = vld [vmem:[%s7 + $0x8] sm:$0xff]
  %v182 = vld [vmem:[%s7 + $0x10] sm:$0xff]
  %v183 = vld [vmem:[%s7 + $0x18] sm:$0xff]
  %vm184 = vcmask 261120
  %v185 = vsel %vm184, %v160, 0.0
  %186 = vadd.xlane.f32.xlu0 %v185
  %v187 = vpop.xlane.xlu0 %186
  %v188 = vsel %vm184, %v165, 0.0
  %189 = vadd.xlane.f32.xlu0 %v188
  %v190 = vpop.xlane.xlu0 %189
  %v191 = vrcp.pop 32.0
  %v192 = vmul.f32 %v187, %v191
  %v193 = vmul.f32 %v190, %v191
  %v194 = vsub.f32 %v160, %v192
  %v195 = vsub.f32 %v165, %v193
  %v196 = vmul.f32 %v194, %v194
  %v197 = vmul.f32 %v195, %v195
  %v198 = vsel %vm184, %v196, 0.0
  %199 = vadd.xlane.f32.xlu0 %v198
  %v200 = vpop.xlane.xlu0 %199
  %v201 = vsel %vm184, %v197, 0.0
  %202 = vadd.xlane.f32.xlu0 %v201
  %v203 = vpop.xlane.xlu0 %202
  %v204 = vmul.f32 %v200, %v191
  %v205 = vmul.f32 %v203, %v191
  %v206 = vadd.f32 %v204, 1e-05
  %v207 = vadd.f32 %v205, 1e-05
  %v208 = vrsqrt.pop %v206
  %v209 = vrsqrt.pop %v207
  %v210 = vmul.f32 %v194, %v208
  %v211 = vmul.f32 %v195, %v209
  %v212 = vlaneseq
  %v213 = vshrl.u32 %v212, 7
  %v214 = vsub.s32 2, %v213
  %v215 = vrot.slane %v76, %v214
  %v216 = vmul.f32 %v210, %v215
  %v217 = vmul.f32 %v211, %v215
  %v218 = vlaneseq
  %v219 = vshrl.u32 %v218, 7
  %v220 = vsub.s32 3, %v219
  %v221 = vrot.slane %v76, %v220
  %v222 = vadd.f32 %v216, %v221
  %v223 = vadd.f32 %v217, %v221
  %v225 = vsel %vm184, %v222, 0
  %v228 = vsel %vm184, %v223, 0
  %230 = vmatprep.subr.mxu0 0.0
  %231 = vmatpush1.msra.mxu0 %v168
  %232 = vmatprep.subr.mxu0 0.0
  %233 = vmatpush1.msra.mxu0 %v169
  %234 = vmatprep.subr.mxu0 0.0
  %235 = vmatpush1.msra.mxu0 %v170
  %236 = vmatprep.subr.mxu0 0.0
  %237 = vmatpush1.msra.mxu0 %v171
  %238 = vmatprep.subr.mxu0 0.0
  %239 = vmatpush1.msra.mxu0 0.0
  %240 = vmatprep.subr.mxu0 0.0
  %241 = vmatpush1.msra.mxu0 0.0
  %242 = vmatprep.subr.mxu0 0.0
  %243 = vmatpush1.msra.mxu0 0.0
  %244 = vmatprep.subr.mxu0 0.0
  %245 = vmatpush1.msra.mxu0 0.0
  %246 = vmatprep.subr.mxu0 0.0
  %247 = vmatpush1.msra.mxu0 0.0
  %248 = vmatprep.subr.mxu0 0.0
  %249 = vmatpush1.msra.mxu0 0.0
  %250 = vmatprep.subr.mxu0 0.0
  %251 = vmatpush1.msra.mxu0 0.0
  %252 = vmatprep.subr.mxu0 0.0
  %253 = vmatpush1.msra.mxu0 0.0
  %254 = vmatprep.subr.mxu0 0.0
  %255 = vmatpush1.msra.mxu0 0.0
  %256 = vmatprep.subr.mxu0 0.0
  %257 = vmatpush1.msra.mxu0 0.0
  %258 = vmatprep.subr.mxu0 0.0
  %259 = vmatpush1.msra.mxu0 0.0
  %260 = vmatprep.subr.mxu0 0.0
  %261 = vmatpush1.msra.mxu0 0.0
  %262 = vmatprep.subr.mxu0 0.0
  %263 = vmatpush1.msra.mxu0 0.0
  %264 = vmatprep.subr.mxu0 0.0
  %265 = vmatpush1.msra.mxu0 0.0
  %266 = vmatprep.subr.mxu0 0.0
  %267 = vmatpush1.msra.mxu0 0.0
  %268 = vmatprep.subr.mxu0 0.0
  %269 = vmatpush1.msra.mxu0 0.0
  %270 = vmatprep.subr.mxu0 0.0
  %271 = vmatpush1.msra.mxu0 0.0
  %272 = vmatprep.subr.mxu0 0.0
  %273 = vmatpush1.msra.mxu0 0.0
  %274 = vmatprep.subr.mxu0 0.0
  %275 = vmatpush1.msra.mxu0 0.0
  %276 = vmatprep.subr.mxu0 0.0
  %277 = vmatpush1.msra.mxu0 0.0
  %278 = vmatprep.subr.mxu0 0.0
  %279 = vmatpush1.msra.mxu0 0.0
  %280 = vmatprep.subr.mxu0 0.0
  %281 = vmatpush1.msra.mxu0 0.0
  %282 = vmatprep.subr.mxu0 0.0
  %283 = vmatpush1.msra.mxu0 0.0
  %284 = vmatprep.subr.mxu0 0.0
  %285 = vmatpush1.msra.mxu0 0.0
  %286 = vmatprep.subr.mxu0 0.0
  %287 = vmatpush1.msra.mxu0 0.0
  %288 = vmatprep.subr.mxu0 0.0
  %289 = vmatpush1.msra.mxu0 0.0
  %290 = vmatprep.subr.mxu0 0.0
  %291 = vmatpush1.msra.mxu0 0.0
  %292 = vmatprep.subr.mxu0 0.0
  %293 = vmatpush1.msra.mxu0 0.0
  %294 = vmatprep.mubr.f32.mxu0 0.0
  %295 = vmatmul.mubr.f32.gmra.mrb[0].mxu0 %v225
  %v296 = vpop.f32.mrb[0].mxu0
  %v297 = vadd.f32 0.0, %v296
  %v298 = vpop.f32.mrb[0].mxu0
  %299 = vmatprep.mubr.f32.mxu0 0.0
  %300 = vmatmul.mubr.f32.gmra.mrb[0].mxu0 %v228
  %v301 = vpop.f32.mrb[0].mxu0
  %v302 = vadd.f32 0.0, %v301
  %v303 = vpop.f32.mrb[0].mxu0
  %304 = vdwg.mxu0
  %v305 = vlaneseq
  %v306 = vshrl.u32 %v305, 7
  %v307 = vsub.s32 4, %v306
  %v308 = vrot.slane %v76, %v307
  %v309 = vadd.f32 %v297, %v308
  %v310 = vadd.f32 %v302, %v308
  %v311 = vlaneseq
  %v312 = vshrl.u32 %v311, 7
  %v313 = vsub.s32 5, %v312
  %v314 = vrot.slane %v76, %v313
  %316 = vrot.lane.b32.xlu0 %v314, 32
  %v317 = vpop.permute.xlu0 %316
  %v319 = vadd.f32 %v297, %v317
  %v320 = vadd.f32 %v302, %v317
  %v321 = vlaneseq
  %v322 = vshrl.u32 %v321, 7
  %v323 = vsub.s32 6, %v322
  %v324 = vrot.slane %v76, %v323
  %326 = vrot.lane.b32.xlu0 %v324, 64
  %v327 = vpop.permute.xlu0 %326
  %v329 = vadd.f32 %v297, %v327
  %v330 = vadd.f32 %v302, %v327
  %333 = vrot.lane.b32.xlu0 %v319, 96
  %v334 = vpop.permute.xlu0 %333
  %335 = vrot.lane.b32.xlu0 %v320, 96
  %v336 = vpop.permute.xlu0 %335
  %v338 = vsel %vm184, %v310, 0
  %v341 = vsel %vm184, %v309, 0
  %v343 = vsel %vm184, %v334, 0
  %v345 = vsel %vm184, %v336, 0
  %347 = vmatprep.subr.mxu0 0.0
  %348 = vmatpush1.xpose.msra.mxu0 %v343
  %349 = vmatprep.subr.mxu0 0.0
  %350 = vmatpush1.xpose.msra.mxu0 %v345
  %351 = vmatprep.subr.mxu0 0.0
  %352 = vmatpush1.xpose.msra.mxu0 0.0
  %353 = vmatprep.subr.mxu0 0.0
  %354 = vmatpush1.xpose.msra.mxu0 0.0
  %355 = vmatprep.subr.mxu0 0.0
  %356 = vmatpush1.xpose.msra.mxu0 0.0
  %357 = vmatprep.subr.mxu0 0.0
  %358 = vmatpush1.xpose.msra.mxu0 0.0
  %359 = vmatprep.subr.mxu0 0.0
  %360 = vmatpush1.xpose.msra.mxu0 0.0
  %361 = vmatprep.subr.mxu0 0.0
  %362 = vmatpush1.xpose.msra.mxu0 0.0
  %363 = vmatprep.subr.mxu0 0.0
  %364 = vmatpush1.xpose.msra.mxu0 0.0
  %365 = vmatprep.subr.mxu0 0.0
  %366 = vmatpush1.xpose.msra.mxu0 0.0
  %367 = vmatprep.subr.mxu0 0.0
  %368 = vmatpush1.xpose.msra.mxu0 0.0
  %369 = vmatprep.subr.mxu0 0.0
  %370 = vmatpush1.xpose.msra.mxu0 0.0
  %371 = vmatprep.subr.mxu0 0.0
  %372 = vmatpush1.xpose.msra.mxu0 0.0
  %373 = vmatprep.subr.mxu0 0.0
  %374 = vmatpush1.xpose.msra.mxu0 0.0
  %375 = vmatprep.subr.mxu0 0.0
  %376 = vmatpush1.xpose.msra.mxu0 0.0
  %377 = vmatprep.subr.mxu0 0.0
  %378 = vmatpush1.xpose.msra.mxu0 0.0
  %379 = vmatprep.subr.mxu0 0.0
  %380 = vmatpush1.xpose.msra.mxu0 0.0
  %381 = vmatprep.subr.mxu0 0.0
  %382 = vmatpush1.xpose.msra.mxu0 0.0
  %383 = vmatprep.subr.mxu0 0.0
  %384 = vmatpush1.xpose.msra.mxu0 0.0
  %385 = vmatprep.subr.mxu0 0.0
  %386 = vmatpush1.xpose.msra.mxu0 0.0
  %387 = vmatprep.subr.mxu0 0.0
  %388 = vmatpush1.xpose.msra.mxu0 0.0
  %389 = vmatprep.subr.mxu0 0.0
  %390 = vmatpush1.xpose.msra.mxu0 0.0
  %391 = vmatprep.subr.mxu0 0.0
  %392 = vmatpush1.xpose.msra.mxu0 0.0
  %393 = vmatprep.subr.mxu0 0.0
  %394 = vmatpush1.xpose.msra.mxu0 0.0
  %395 = vmatprep.subr.mxu0 0.0
  %396 = vmatpush1.xpose.msra.mxu0 0.0
  %397 = vmatprep.subr.mxu0 0.0
  %398 = vmatpush1.xpose.msra.mxu0 0.0
  %399 = vmatprep.subr.mxu0 0.0
  %400 = vmatpush1.xpose.msra.mxu0 0.0
  %401 = vmatprep.subr.mxu0 0.0
  %402 = vmatpush1.xpose.msra.mxu0 0.0
  %403 = vmatprep.subr.mxu0 0.0
  %404 = vmatpush1.xpose.msra.mxu0 0.0
  %405 = vmatprep.subr.mxu0 0.0
  %406 = vmatpush1.xpose.msra.mxu0 0.0
  %407 = vmatprep.subr.mxu0 0.0
  %408 = vmatpush1.xpose.msra.mxu0 0.0
  %409 = vmatprep.subr.mxu0 0.0
  %410 = vmatpush1.xpose.msra.mxu0 0.0
  %411 = vmatprep.mubr.f32.mxu0 0.0
  %412 = vmatmul.mubr.f32.gmra.mrb[0].mxu0 %v338
  %v413 = vpop.f32.mrb[0].mxu0
  %v414 = vadd.f32 0.0, %v413
  %v415 = vpop.f32.mrb[0].mxu0
  %416 = vmatprep.mubr.f32.mxu0 0.0
  %417 = vmatmul.mubr.f32.gmra.mrb[0].mxu0 %v341
  %v418 = vpop.f32.mrb[0].mxu0
  %v419 = vadd.f32 0.0, %v418
  %v420 = vpop.f32.mrb[0].mxu0
  %421 = vdwg.mxu0
  %v422 = vmul.f32 %v414, 0.17677669
  %v423 = vmul.f32 %v419, 0.17677669
  %v424 = vadd.f32 %v422, %v74
  %v425 = vadd.f32 %v423, %v75
  %vm426 = vcmask 130048
  %v427 = vsel %vm426, %v424, -inf
  %428 = vmax.xlane.f32.xlu0 %v427
  %v429 = vpop.xlane.xlu0 %428
  %v430 = vsel %vm426, %v425, -inf
  %431 = vmax.xlane.f32.xlu0 %v430
  %v432 = vpop.xlane.xlu0 %431
  %v433 = vsub.f32 %v424, %v429
  %v434 = vsub.f32 %v425, %v432
  %v435 = vmul.f32 %v433, 1.442695
  %v436 = vpow.pop %v435
  %v437 = vmul.f32 %v434, 1.442695
  %v438 = vpow.pop %v437
  %v439 = vsel %vm426, %v436, 0.0
  %440 = vadd.xlane.f32.xlu0 %v439
  %v441 = vpop.xlane.xlu0 %440
  %v442 = vsel %vm426, %v438, 0.0
  %443 = vadd.xlane.f32.xlu0 %v442
  %v444 = vpop.xlane.xlu0 %443
  %v445 = vrcp.pop %v441
  %v446 = vmul.f32 %v436, %v445
  %v447 = vrcp.pop %v444
  %v448 = vmul.f32 %v438, %v447
  %451 = vrot.lane.b32.xlu0 %v329, 64
  %v452 = vpop.permute.xlu0 %451
  %453 = vrot.lane.b32.xlu0 %v330, 64
  %v454 = vpop.permute.xlu0 %453
  %v458 = vsel %vm426, %v446, 0
  %v461 = vsel %vm426, %v448, 0
  %463 = vmatprep.subr.mxu0 0.0
  %464 = vmatpush1.msra.mxu0 %v452
  %465 = vmatprep.subr.mxu0 0.0
  %466 = vmatpush1.msra.mxu0 %v454
  %467 = vmatprep.subr.mxu0 0.0
  %468 = vmatpush1.msra.mxu0 0.0
  %469 = vmatprep.subr.mxu0 0.0
  %470 = vmatpush1.msra.mxu0 0.0
  %471 = vmatprep.subr.mxu0 0.0
  %472 = vmatpush1.msra.mxu0 0.0
  %473 = vmatprep.subr.mxu0 0.0
  %474 = vmatpush1.msra.mxu0 0.0
  %475 = vmatprep.subr.mxu0 0.0
  %476 = vmatpush1.msra.mxu0 0.0
  %477 = vmatprep.subr.mxu0 0.0
  %478 = vmatpush1.msra.mxu0 0.0
  %479 = vmatprep.subr.mxu0 0.0
  %480 = vmatpush1.msra.mxu0 0.0
  %481 = vmatprep.subr.mxu0 0.0
  %482 = vmatpush1.msra.mxu0 0.0
  %483 = vmatprep.subr.mxu0 0.0
  %484 = vmatpush1.msra.mxu0 0.0
  %485 = vmatprep.subr.mxu0 0.0
  %486 = vmatpush1.msra.mxu0 0.0
  %487 = vmatprep.subr.mxu0 0.0
  %488 = vmatpush1.msra.mxu0 0.0
  %489 = vmatprep.subr.mxu0 0.0
  %490 = vmatpush1.msra.mxu0 0.0
  %491 = vmatprep.subr.mxu0 0.0
  %492 = vmatpush1.msra.mxu0 0.0
  %493 = vmatprep.subr.mxu0 0.0
  %494 = vmatpush1.msra.mxu0 0.0
  %495 = vmatprep.subr.mxu0 0.0
  %496 = vmatpush1.msra.mxu0 0.0
  %497 = vmatprep.subr.mxu0 0.0
  %498 = vmatpush1.msra.mxu0 0.0
  %499 = vmatprep.subr.mxu0 0.0
  %500 = vmatpush1.msra.mxu0 0.0
  %501 = vmatprep.subr.mxu0 0.0
  %502 = vmatpush1.msra.mxu0 0.0
  %503 = vmatprep.subr.mxu0 0.0
  %504 = vmatpush1.msra.mxu0 0.0
  %505 = vmatprep.subr.mxu0 0.0
  %506 = vmatpush1.msra.mxu0 0.0
  %507 = vmatprep.subr.mxu0 0.0
  %508 = vmatpush1.msra.mxu0 0.0
  %509 = vmatprep.subr.mxu0 0.0
  %510 = vmatpush1.msra.mxu0 0.0
  %511 = vmatprep.subr.mxu0 0.0
  %512 = vmatpush1.msra.mxu0 0.0
  %513 = vmatprep.subr.mxu0 0.0
  %514 = vmatpush1.msra.mxu0 0.0
  %515 = vmatprep.subr.mxu0 0.0
  %516 = vmatpush1.msra.mxu0 0.0
  %517 = vmatprep.subr.mxu0 0.0
  %518 = vmatpush1.msra.mxu0 0.0
  %519 = vmatprep.subr.mxu0 0.0
  %520 = vmatpush1.msra.mxu0 0.0
  %521 = vmatprep.subr.mxu0 0.0
  %522 = vmatpush1.msra.mxu0 0.0
  %523 = vmatprep.subr.mxu0 0.0
  %524 = vmatpush1.msra.mxu0 0.0
  %525 = vmatprep.subr.mxu0 0.0
  %526 = vmatpush1.msra.mxu0 0.0
  %527 = vmatprep.mubr.f32.mxu0 0.0
  %528 = vmatmul.mubr.f32.gmra.mrb[0].mxu0 %v458
  %v529 = vpop.f32.mrb[0].mxu0
  %v530 = vadd.f32 0.0, %v529
  %v531 = vpop.f32.mrb[0].mxu0
  %532 = vmatprep.mubr.f32.mxu0 0.0
  %533 = vmatmul.mubr.f32.gmra.mrb[0].mxu0 %v461
  %v534 = vpop.f32.mrb[0].mxu0
  %v535 = vadd.f32 0.0, %v534
  %v536 = vpop.f32.mrb[0].mxu0
  %537 = vdwg.mxu0
  %v538 = vlaneseq
  %v539 = vshrl.u32 %v538, 7
  %v540 = vsub.s32 7, %v539
  %v541 = vrot.slane %v76, %v540
  %v543 = vsel %vm184, %v530, 0
  %v546 = vsel %vm184, %v535, 0
  %548 = vmatprep.subr.mxu0 0.0
  %549 = vmatpush1.msra.mxu0 %v172
  %550 = vmatprep.subr.mxu0 0.0
  %551 = vmatpush1.msra.mxu0 %v173
  %552 = vmatprep.subr.mxu0 0.0
  %553 = vmatpush1.msra.mxu0 %v174
  %554 = vmatprep.subr.mxu0 0.0
  %555 = vmatpush1.msra.mxu0 %v175
  %556 = vmatprep.subr.mxu0 0.0
  %557 = vmatpush1.msra.mxu0 0.0
  %558 = vmatprep.subr.mxu0 0.0
  %559 = vmatpush1.msra.mxu0 0.0
  %560 = vmatprep.subr.mxu0 0.0
  %561 = vmatpush1.msra.mxu0 0.0
  %562 = vmatprep.subr.mxu0 0.0
  %563 = vmatpush1.msra.mxu0 0.0
  %564 = vmatprep.subr.mxu0 0.0
  %565 = vmatpush1.msra.mxu0 0.0
  %566 = vmatprep.subr.mxu0 0.0
  %567 = vmatpush1.msra.mxu0 0.0
  %568 = vmatprep.subr.mxu0 0.0
  %569 = vmatpush1.msra.mxu0 0.0
  %570 = vmatprep.subr.mxu0 0.0
  %571 = vmatpush1.msra.mxu0 0.0
  %572 = vmatprep.subr.mxu0 0.0
  %573 = vmatpush1.msra.mxu0 0.0
  %574 = vmatprep.subr.mxu0 0.0
  %575 = vmatpush1.msra.mxu0 0.0
  %576 = vmatprep.subr.mxu0 0.0
  %577 = vmatpush1.msra.mxu0 0.0
  %578 = vmatprep.subr.mxu0 0.0
  %579 = vmatpush1.msra.mxu0 0.0
  %580 = vmatprep.subr.mxu0 0.0
  %581 = vmatpush1.msra.mxu0 0.0
  %582 = vmatprep.subr.mxu0 0.0
  %583 = vmatpush1.msra.mxu0 0.0
  %584 = vmatprep.subr.mxu0 0.0
  %585 = vmatpush1.msra.mxu0 0.0
  %586 = vmatprep.subr.mxu0 0.0
  %587 = vmatpush1.msra.mxu0 0.0
  %588 = vmatprep.subr.mxu0 0.0
  %589 = vmatpush1.msra.mxu0 0.0
  %590 = vmatprep.subr.mxu0 0.0
  %591 = vmatpush1.msra.mxu0 0.0
  %592 = vmatprep.subr.mxu0 0.0
  %593 = vmatpush1.msra.mxu0 0.0
  %594 = vmatprep.subr.mxu0 0.0
  %595 = vmatpush1.msra.mxu0 0.0
  %596 = vmatprep.subr.mxu0 0.0
  %597 = vmatpush1.msra.mxu0 0.0
  %598 = vmatprep.subr.mxu0 0.0
  %599 = vmatpush1.msra.mxu0 0.0
  %600 = vmatprep.subr.mxu0 0.0
  %601 = vmatpush1.msra.mxu0 0.0
  %602 = vmatprep.subr.mxu0 0.0
  %603 = vmatpush1.msra.mxu0 0.0
  %604 = vmatprep.subr.mxu0 0.0
  %605 = vmatpush1.msra.mxu0 0.0
  %606 = vmatprep.subr.mxu0 0.0
  %607 = vmatpush1.msra.mxu0 0.0
  %608 = vmatprep.subr.mxu0 0.0
  %609 = vmatpush1.msra.mxu0 0.0
  %610 = vmatprep.subr.mxu0 0.0
  %611 = vmatpush1.msra.mxu0 0.0
  %612 = vmatprep.mubr.f32.mxu0 0.0
  %613 = vmatmul.mubr.f32.gmra.mrb[0].mxu0 %v543
  %v614 = vpop.f32.mrb[0].mxu0
  %v615 = vadd.f32 %v541, %v614
  %v616 = vpop.f32.mrb[0].mxu0
  %617 = vmatprep.mubr.f32.mxu0 0.0
  %618 = vmatmul.mubr.f32.gmra.mrb[0].mxu0 %v546
  %v619 = vpop.f32.mrb[0].mxu0
  %v620 = vadd.f32 %v541, %v619
  %v621 = vpop.f32.mrb[0].mxu0
  %622 = vdwg.mxu0
  %v623 = vadd.f32 %v222, %v615
  %v624 = vadd.f32 %v223, %v620
  %v625 = vsel %vm184, %v623, 0.0
  %626 = vadd.xlane.f32.xlu0 %v625
  %v627 = vpop.xlane.xlu0 %626
  %v628 = vsel %vm184, %v624, 0.0
  %629 = vadd.xlane.f32.xlu0 %v628
  %v630 = vpop.xlane.xlu0 %629
  %v631 = vmul.f32 %v627, %v191
  %v632 = vmul.f32 %v630, %v191
  %v633 = vsub.f32 %v623, %v631
  %v634 = vsub.f32 %v624, %v632
  %v635 = vmul.f32 %v633, %v633
  %v636 = vmul.f32 %v634, %v634
  %v637 = vsel %vm184, %v635, 0.0
  %638 = vadd.xlane.f32.xlu0 %v637
  %v639 = vpop.xlane.xlu0 %638
  %v640 = vsel %vm184, %v636, 0.0
  %641 = vadd.xlane.f32.xlu0 %v640
  %v642 = vpop.xlane.xlu0 %641
  %v643 = vmul.f32 %v639, %v191
  %v644 = vmul.f32 %v642, %v191
  %v645 = vadd.f32 %v643, 1e-05
  %v646 = vadd.f32 %v644, 1e-05
  %v647 = vrsqrt.pop %v645
  %v648 = vrsqrt.pop %v646
  %v649 = vmul.f32 %v633, %v647
  %v650 = vmul.f32 %v634, %v648
  %v651 = vlaneseq
  %v652 = vshrl.u32 %v651, 7
  %v653 = vsub.s32 0, %v652
  %v654 = vrot.slane %v77, %v653
  %v655 = vmul.f32 %v649, %v654
  %v656 = vmul.f32 %v650, %v654
  %v657 = vlaneseq
  %v658 = vshrl.u32 %v657, 7
  %v659 = vsub.s32 1, %v658
  %v660 = vrot.slane %v77, %v659
  %v661 = vadd.f32 %v655, %v660
  %v662 = vadd.f32 %v656, %v660
  %v663 = vlaneseq
  %v664 = vshrl.u32 %v663, 7
  %v665 = vsub.s32 2, %v664
  %v666 = vrot.slane %v77, %v665
  %v668 = vsel %vm184, %v661, 0
  %v671 = vsel %vm184, %v662, 0
  %673 = vmatprep.subr.mxu0 0.0
  %674 = vmatpush1.msra.mxu0 %v176
  %675 = vmatprep.subr.mxu0 0.0
  %676 = vmatpush1.msra.mxu0 %v177
  %677 = vmatprep.subr.mxu0 0.0
  %678 = vmatpush1.msra.mxu0 %v178
  %679 = vmatprep.subr.mxu0 0.0
  %680 = vmatpush1.msra.mxu0 %v179
  %681 = vmatprep.subr.mxu0 0.0
  %682 = vmatpush1.msra.mxu0 0.0
  %683 = vmatprep.subr.mxu0 0.0
  %684 = vmatpush1.msra.mxu0 0.0
  %685 = vmatprep.subr.mxu0 0.0
  %686 = vmatpush1.msra.mxu0 0.0
  %687 = vmatprep.subr.mxu0 0.0
  %688 = vmatpush1.msra.mxu0 0.0
  %689 = vmatprep.subr.mxu0 0.0
  %690 = vmatpush1.msra.mxu0 0.0
  %691 = vmatprep.subr.mxu0 0.0
  %692 = vmatpush1.msra.mxu0 0.0
  %693 = vmatprep.subr.mxu0 0.0
  %694 = vmatpush1.msra.mxu0 0.0
  %695 = vmatprep.subr.mxu0 0.0
  %696 = vmatpush1.msra.mxu0 0.0
  %697 = vmatprep.subr.mxu0 0.0
  %698 = vmatpush1.msra.mxu0 0.0
  %699 = vmatprep.subr.mxu0 0.0
  %700 = vmatpush1.msra.mxu0 0.0
  %701 = vmatprep.subr.mxu0 0.0
  %702 = vmatpush1.msra.mxu0 0.0
  %703 = vmatprep.subr.mxu0 0.0
  %704 = vmatpush1.msra.mxu0 0.0
  %705 = vmatprep.subr.mxu0 0.0
  %706 = vmatpush1.msra.mxu0 0.0
  %707 = vmatprep.subr.mxu0 0.0
  %708 = vmatpush1.msra.mxu0 0.0
  %709 = vmatprep.subr.mxu0 0.0
  %710 = vmatpush1.msra.mxu0 0.0
  %711 = vmatprep.subr.mxu0 0.0
  %712 = vmatpush1.msra.mxu0 0.0
  %713 = vmatprep.subr.mxu0 0.0
  %714 = vmatpush1.msra.mxu0 0.0
  %715 = vmatprep.subr.mxu0 0.0
  %716 = vmatpush1.msra.mxu0 0.0
  %717 = vmatprep.subr.mxu0 0.0
  %718 = vmatpush1.msra.mxu0 0.0
  %719 = vmatprep.subr.mxu0 0.0
  %720 = vmatpush1.msra.mxu0 0.0
  %721 = vmatprep.subr.mxu0 0.0
  %722 = vmatpush1.msra.mxu0 0.0
  %723 = vmatprep.subr.mxu0 0.0
  %724 = vmatpush1.msra.mxu0 0.0
  %725 = vmatprep.subr.mxu0 0.0
  %726 = vmatpush1.msra.mxu0 0.0
  %727 = vmatprep.subr.mxu0 0.0
  %728 = vmatpush1.msra.mxu0 0.0
  %729 = vmatprep.subr.mxu0 0.0
  %730 = vmatpush1.msra.mxu0 0.0
  %731 = vmatprep.subr.mxu0 0.0
  %732 = vmatpush1.msra.mxu0 0.0
  %733 = vmatprep.subr.mxu0 0.0
  %734 = vmatpush1.msra.mxu0 0.0
  %735 = vmatprep.subr.mxu0 0.0
  %736 = vmatpush1.msra.mxu0 0.0
  %737 = vmatprep.mubr.f32.mxu0 0.0
  %738 = vmatmul.mubr.f32.gmra.mrb[0].mxu0 %v668
  %v739 = vpop.f32.mrb[0].mxu0
  %v740 = vadd.f32 %v666, %v739
  %v741 = vpop.f32.mrb[0].mxu0
  %742 = vmatprep.mubr.f32.mxu0 0.0
  %743 = vmatmul.mubr.f32.gmra.mrb[0].mxu0 %v671
  %v744 = vpop.f32.mrb[0].mxu0
  %v745 = vadd.f32 %v666, %v744
  %v746 = vpop.f32.mrb[0].mxu0
  %747 = vdwg.mxu0
  %v748 = vsel %vm184, %v740, 0.0
  %749 = vadd.xlane.f32.xlu0 %v748
  %v750 = vpop.xlane.xlu0 %749
  %v751 = vsel %vm184, %v745, 0.0
  %752 = vadd.xlane.f32.xlu0 %v751
  %v753 = vpop.xlane.xlu0 %752
  %v754 = vmul.f32 %v750, %v191
  %v755 = vmul.f32 %v753, %v191
  %v756 = vsub.f32 %v740, %v754
  %v757 = vsub.f32 %v745, %v755
  %v758 = vmul.f32 %v756, %v756
  %v759 = vmul.f32 %v757, %v757
  %v760 = vsel %vm184, %v758, 0.0
  %761 = vadd.xlane.f32.xlu0 %v760
  %v762 = vpop.xlane.xlu0 %761
  %v763 = vsel %vm184, %v759, 0.0
  %764 = vadd.xlane.f32.xlu0 %v763
  %v765 = vpop.xlane.xlu0 %764
  %v766 = vmul.f32 %v762, %v191
  %v767 = vmul.f32 %v765, %v191
  %v768 = vadd.f32 %v766, 1e-05
  %v769 = vadd.f32 %v767, 1e-05
  %v770 = vrsqrt.pop %v768
  %v771 = vrsqrt.pop %v769
  %v772 = vmul.f32 %v756, %v770
  %v773 = vmul.f32 %v757, %v771
  %v774 = vlaneseq
  %v775 = vshrl.u32 %v774, 7
  %v776 = vsub.s32 3, %v775
  %v777 = vrot.slane %v77, %v776
  %v778 = vmul.f32 %v772, %v777
  %v779 = vmul.f32 %v773, %v777
  %v780 = vlaneseq
  %v781 = vshrl.u32 %v780, 7
  %v782 = vsub.s32 4, %v781
  %v783 = vrot.slane %v77, %v782
  %v784 = vadd.f32 %v778, %v783
  %v785 = vadd.f32 %v779, %v783
  %v786 = vmul.f32 %v784, 0.70710677
  %v787 = vmul.f32 %v785, 0.70710677
  %v788 = vand.u32 2147483647, %v786
  %v789 = vand.u32 2147483647, %v787
  %v790 = vmul.f32 %v788, 0.3275911
  %v791 = vmul.f32 %v789, 0.3275911
  %v792 = vadd.f32 %v790, 1.0
  %v793 = vadd.f32 %v791, 1.0
  %v794 = vrcp.pop %v792
  %v795 = vmul.f32 1.0, %v794
  %v796 = vrcp.pop %v793
  %v797 = vmul.f32 1.0, %v796
  %v798 = vmul.f32 %v795, 1.0614054
  %v799 = vmul.f32 %v797, 1.0614054
  %v800 = vadd.f32 %v798, -1.4531521
  %v801 = vadd.f32 %v799, -1.4531521
  %v802 = vmul.f32 %v795, %v800
  %v803 = vmul.f32 %v797, %v801
  %v804 = vadd.f32 %v802, 1.4214138
  %v805 = vadd.f32 %v803, 1.4214138
  %v806 = vmul.f32 %v795, %v804
  %v807 = vmul.f32 %v797, %v805
  %v808 = vadd.f32 %v806, -0.28449672
  %v809 = vadd.f32 %v807, -0.28449672
  %v810 = vmul.f32 %v795, %v808
  %v811 = vmul.f32 %v797, %v809
  %v812 = vadd.f32 %v810, 0.2548296
  %v813 = vadd.f32 %v811, 0.2548296
  %v814 = vmul.f32 %v795, %v812
  %v815 = vmul.f32 %v797, %v813
  %v816 = vsub.f32 0.0, %v788
  %v817 = vsub.f32 0.0, %v789
  %v818 = vmul.f32 %v816, %v788
  %v819 = vmul.f32 %v817, %v789
  %v820 = vmul.f32 %v818, 1.442695
  %v821 = vpow.pop %v820
  %v822 = vmul.f32 %v819, 1.442695
  %v823 = vpow.pop %v822
  %v824 = vmul.f32 %v814, %v821
  %v825 = vmul.f32 %v815, %v823
  %v826 = vsub.f32 1.0, %v824
  %v827 = vsub.f32 1.0, %v825
  %vm828 = vcmp.ge.f32.partialorder %v786, 0.0
  %vm829 = vcmp.ge.f32.partialorder %v787, 0.0
  %v830 = vsub.f32 0.0, %v826
  %v831 = vsub.f32 0.0, %v827
  %v832 = vsel %vm828, %v826, %v830
  %v833 = vsel %vm829, %v827, %v831
  %v834 = vmul.f32 %v784, 0.5
  %v835 = vmul.f32 %v785, 0.5
  %v836 = vadd.f32 %v832, 1.0
  %v837 = vadd.f32 %v833, 1.0
  %v838 = vmul.f32 %v834, %v836
  %v839 = vmul.f32 %v835, %v837
  %v840 = vlaneseq
  %v841 = vshrl.u32 %v840, 7
  %v842 = vsub.s32 5, %v841
  %v843 = vrot.slane %v77, %v842
  %v845 = vsel %vm184, %v838, 0
  %v848 = vsel %vm184, %v839, 0
  %850 = vmatprep.subr.mxu0 0.0
  %851 = vmatpush1.msra.mxu0 %v180
  %852 = vmatprep.subr.mxu0 0.0
  %853 = vmatpush1.msra.mxu0 %v181
  %854 = vmatprep.subr.mxu0 0.0
  %855 = vmatpush1.msra.mxu0 %v182
  %856 = vmatprep.subr.mxu0 0.0
  %857 = vmatpush1.msra.mxu0 %v183
  %858 = vmatprep.subr.mxu0 0.0
  %859 = vmatpush1.msra.mxu0 0.0
  %860 = vmatprep.subr.mxu0 0.0
  %861 = vmatpush1.msra.mxu0 0.0
  %862 = vmatprep.subr.mxu0 0.0
  %863 = vmatpush1.msra.mxu0 0.0
  %864 = vmatprep.subr.mxu0 0.0
  %865 = vmatpush1.msra.mxu0 0.0
  %866 = vmatprep.subr.mxu0 0.0
  %867 = vmatpush1.msra.mxu0 0.0
  %868 = vmatprep.subr.mxu0 0.0
  %869 = vmatpush1.msra.mxu0 0.0
  %870 = vmatprep.subr.mxu0 0.0
  %871 = vmatpush1.msra.mxu0 0.0
  %872 = vmatprep.subr.mxu0 0.0
  %873 = vmatpush1.msra.mxu0 0.0
  %874 = vmatprep.subr.mxu0 0.0
  %875 = vmatpush1.msra.mxu0 0.0
  %876 = vmatprep.subr.mxu0 0.0
  %877 = vmatpush1.msra.mxu0 0.0
  %878 = vmatprep.subr.mxu0 0.0
  %879 = vmatpush1.msra.mxu0 0.0
  %880 = vmatprep.subr.mxu0 0.0
  %881 = vmatpush1.msra.mxu0 0.0
  %882 = vmatprep.subr.mxu0 0.0
  %883 = vmatpush1.msra.mxu0 0.0
  %884 = vmatprep.subr.mxu0 0.0
  %885 = vmatpush1.msra.mxu0 0.0
  %886 = vmatprep.subr.mxu0 0.0
  %887 = vmatpush1.msra.mxu0 0.0
  %888 = vmatprep.subr.mxu0 0.0
  %889 = vmatpush1.msra.mxu0 0.0
  %890 = vmatprep.subr.mxu0 0.0
  %891 = vmatpush1.msra.mxu0 0.0
  %892 = vmatprep.subr.mxu0 0.0
  %893 = vmatpush1.msra.mxu0 0.0
  %894 = vmatprep.subr.mxu0 0.0
  %895 = vmatpush1.msra.mxu0 0.0
  %896 = vmatprep.subr.mxu0 0.0
  %897 = vmatpush1.msra.mxu0 0.0
  %898 = vmatprep.subr.mxu0 0.0
  %899 = vmatpush1.msra.mxu0 0.0
  %900 = vmatprep.subr.mxu0 0.0
  %901 = vmatpush1.msra.mxu0 0.0
  %902 = vmatprep.subr.mxu0 0.0
  %903 = vmatpush1.msra.mxu0 0.0
  %904 = vmatprep.subr.mxu0 0.0
  %905 = vmatpush1.msra.mxu0 0.0
  %906 = vmatprep.subr.mxu0 0.0
  %907 = vmatpush1.msra.mxu0 0.0
  %908 = vmatprep.subr.mxu0 0.0
  %909 = vmatpush1.msra.mxu0 0.0
  %910 = vmatprep.subr.mxu0 0.0
  %911 = vmatpush1.msra.mxu0 0.0
  %912 = vmatprep.subr.mxu0 0.0
  %913 = vmatpush1.msra.mxu0 0.0
  %914 = vmatprep.mubr.f32.mxu0 0.0
  %915 = vmatmul.mubr.f32.gmra.mrb[0].mxu0 %v845
  %v916 = vpop.f32.mrb[0].mxu0
  %v917 = vadd.f32 %v843, %v916
  %v918 = vpop.f32.mrb[0].mxu0
  %919 = vmatprep.mubr.f32.mxu0 0.0
  %920 = vmatmul.mubr.f32.gmra.mrb[0].mxu0 %v848
  %v921 = vpop.f32.mrb[0].mxu0
  %v922 = vadd.f32 %v843, %v921
  %v923 = vpop.f32.mrb[0].mxu0
  %924 = vdwg.mxu0
  %v925 = vsel %vm184, %v917, 0.0
  %926 = vadd.xlane.f32.xlu0 %v925
  %v927 = vpop.xlane.xlu0 %926
  %v928 = vsel %vm184, %v922, 0.0
  %929 = vadd.xlane.f32.xlu0 %v928
  %v930 = vpop.xlane.xlu0 %929
  %v931 = vmul.f32 %v927, %v191
  %v932 = vmul.f32 %v930, %v191
  %v933 = vsub.f32 %v917, %v931
  %v934 = vsub.f32 %v922, %v932
  %v935 = vmul.f32 %v933, %v933
  %v936 = vmul.f32 %v934, %v934
  %v937 = vsel %vm184, %v935, 0.0
  %938 = vadd.xlane.f32.xlu0 %v937
  %v939 = vpop.xlane.xlu0 %938
  %v940 = vsel %vm184, %v936, 0.0
  %941 = vadd.xlane.f32.xlu0 %v940
  %v942 = vpop.xlane.xlu0 %941
  %v943 = vmul.f32 %v939, %v191
  %v944 = vmul.f32 %v942, %v191
  %v945 = vadd.f32 %v943, 1e-05
  %v946 = vadd.f32 %v944, 1e-05
  %v947 = vrsqrt.pop %v945
  %v948 = vrsqrt.pop %v946
  %v949 = vmul.f32 %v933, %v947
  %v950 = vmul.f32 %v934, %v948
  %v951 = vlaneseq
  %v952 = vshrl.u32 %v951, 7
  %v953 = vsub.s32 6, %v952
  %v954 = vrot.slane %v77, %v953
  %v955 = vmul.f32 %v949, %v954
  %v956 = vmul.f32 %v950, %v954
  %v957 = vlaneseq
  %v958 = vshrl.u32 %v957, 7
  %v959 = vsub.s32 7, %v958
  %v960 = vrot.slane %v77, %v959
  %v961 = vadd.f32 %v955, %v960
  %v962 = vadd.f32 %v956, %v960
  %v963 = vadd.f32 %v661, %v961
  %v964 = vadd.f32 %v662, %v962
  %v965 = vld [vmem:[%s8] sm:$0xf]
  %v966 = vld [vmem:[%s9] sm:$0xff]
  %v967 = vld [vmem:[%s9 + $0x8] sm:$0xff]
  %v968 = vld [vmem:[%s9 + $0x10] sm:$0xff]
  %v969 = vld [vmem:[%s9 + $0x18] sm:$0xff]
  %v970 = vld [vmem:[%s9 + $0x20] sm:$0xff]
  %v971 = vld [vmem:[%s9 + $0x28] sm:$0xff]
  %v972 = vld [vmem:[%s9 + $0x30] sm:$0xff]
  %v973 = vld [vmem:[%s9 + $0x38] sm:$0xff]
  %v974 = vld [vmem:[%s9 + $0x40] sm:$0xff]
  %v975 = vld [vmem:[%s9 + $0x48] sm:$0xff]
  %v976 = vld [vmem:[%s9 + $0x50] sm:$0xff]
  %v977 = vld [vmem:[%s9 + $0x58] sm:$0xff]
  %v978 = vld [vmem:[%s9 + $0x60] sm:$0xff]
  %v979 = vld [vmem:[%s9 + $0x68] sm:$0xff]
  %v980 = vld [vmem:[%s9 + $0x70] sm:$0xff]
  %v981 = vld [vmem:[%s9 + $0x78] sm:$0xff]
  %v982 = vld [vmem:[%s10] sm:$0xff]
  %v983 = vld [vmem:[%s10 + $0x8] sm:$0xff]
  %v984 = vld [vmem:[%s10 + $0x10] sm:$0xff]
  %v985 = vld [vmem:[%s10 + $0x18] sm:$0xff]
  %v987 = vsel %vm184, %v965, 0
  %v990 = vsel %vm184, %v963, 0
  %v993 = vsel %vm184, %v964, 0
  %995 = vmatprep.subr.mxu0 0.0
  %996 = vmatpush1.xpose.msra.mxu0 %v990
  %997 = vmatprep.subr.mxu0 0.0
  %998 = vmatpush1.xpose.msra.mxu0 %v993
  %999 = vmatprep.subr.mxu0 0.0
  %1000 = vmatpush1.xpose.msra.mxu0 0.0
  %1001 = vmatprep.subr.mxu0 0.0
  %1002 = vmatpush1.xpose.msra.mxu0 0.0
  %1003 = vmatprep.subr.mxu0 0.0
  %1004 = vmatpush1.xpose.msra.mxu0 0.0
  %1005 = vmatprep.subr.mxu0 0.0
  %1006 = vmatpush1.xpose.msra.mxu0 0.0
  %1007 = vmatprep.subr.mxu0 0.0
  %1008 = vmatpush1.xpose.msra.mxu0 0.0
  %1009 = vmatprep.subr.mxu0 0.0
  %1010 = vmatpush1.xpose.msra.mxu0 0.0
  %1011 = vmatprep.subr.mxu0 0.0
  %1012 = vmatpush1.xpose.msra.mxu0 0.0
  %1013 = vmatprep.subr.mxu0 0.0
  %1014 = vmatpush1.xpose.msra.mxu0 0.0
  %1015 = vmatprep.subr.mxu0 0.0
  %1016 = vmatpush1.xpose.msra.mxu0 0.0
  %1017 = vmatprep.subr.mxu0 0.0
  %1018 = vmatpush1.xpose.msra.mxu0 0.0
  %1019 = vmatprep.subr.mxu0 0.0
  %1020 = vmatpush1.xpose.msra.mxu0 0.0
  %1021 = vmatprep.subr.mxu0 0.0
  %1022 = vmatpush1.xpose.msra.mxu0 0.0
  %1023 = vmatprep.subr.mxu0 0.0
  %1024 = vmatpush1.xpose.msra.mxu0 0.0
  %1025 = vmatprep.subr.mxu0 0.0
  %1026 = vmatpush1.xpose.msra.mxu0 0.0
  %1027 = vmatprep.subr.mxu0 0.0
  %1028 = vmatpush1.xpose.msra.mxu0 0.0
  %1029 = vmatprep.subr.mxu0 0.0
  %1030 = vmatpush1.xpose.msra.mxu0 0.0
  %1031 = vmatprep.subr.mxu0 0.0
  %1032 = vmatpush1.xpose.msra.mxu0 0.0
  %1033 = vmatprep.subr.mxu0 0.0
  %1034 = vmatpush1.xpose.msra.mxu0 0.0
  %1035 = vmatprep.subr.mxu0 0.0
  %1036 = vmatpush1.xpose.msra.mxu0 0.0
  %1037 = vmatprep.subr.mxu0 0.0
  %1038 = vmatpush1.xpose.msra.mxu0 0.0
  %1039 = vmatprep.subr.mxu0 0.0
  %1040 = vmatpush1.xpose.msra.mxu0 0.0
  %1041 = vmatprep.subr.mxu0 0.0
  %1042 = vmatpush1.xpose.msra.mxu0 0.0
  %1043 = vmatprep.subr.mxu0 0.0
  %1044 = vmatpush1.xpose.msra.mxu0 0.0
  %1045 = vmatprep.subr.mxu0 0.0
  %1046 = vmatpush1.xpose.msra.mxu0 0.0
  %1047 = vmatprep.subr.mxu0 0.0
  %1048 = vmatpush1.xpose.msra.mxu0 0.0
  %1049 = vmatprep.subr.mxu0 0.0
  %1050 = vmatpush1.xpose.msra.mxu0 0.0
  %1051 = vmatprep.subr.mxu0 0.0
  %1052 = vmatpush1.xpose.msra.mxu0 0.0
  %1053 = vmatprep.subr.mxu0 0.0
  %1054 = vmatpush1.xpose.msra.mxu0 0.0
  %1055 = vmatprep.subr.mxu0 0.0
  %1056 = vmatpush1.xpose.msra.mxu0 0.0
  %1057 = vmatprep.subr.mxu0 0.0
  %1058 = vmatpush1.xpose.msra.mxu0 0.0
  %1059 = vmatprep.mubr.f32.mxu0 0.0
  %1060 = vmatmul.mubr.f32.gmra.mrb[0].mxu0 %v987
  %v1061 = vpop.f32.mrb[0].mxu0
  %v1062 = vadd.f32 0.0, %v1061
  %v1063 = vpop.f32.mrb[0].mxu0
  %1064 = vdwg.mxu0
  %v1069 = vcombine.high %v982, %v982
  %v1070 = vcombine.high %v983, %v983
  %v1071 = vcombine.high %v984, %v984
  %v1072 = vcombine.high %v985, %v985
  %v1078 = vsel %vm426, %v1062, 0
  %1080 = vmatprep.subr.mxu0 %v967
  %1081 = vmatpush1.msra.mxu0 %v966
  %1082 = vmatprep.subr.mxu0 %v975
  %1083 = vmatpush1.msra.mxu0 %v974
  %1084 = vmatprep.subr.mxu0 0.0
  %1085 = vmatpush1.msra.mxu0 0.0
  %1086 = vmatprep.subr.mxu0 0.0
  %1087 = vmatpush1.msra.mxu0 0.0
  %1088 = vmatprep.subr.mxu0 0.0
  %1089 = vmatpush1.msra.mxu0 0.0
  %1090 = vmatprep.subr.mxu0 0.0
  %1091 = vmatpush1.msra.mxu0 0.0
  %1092 = vmatprep.subr.mxu0 0.0
  %1093 = vmatpush1.msra.mxu0 0.0
  %1094 = vmatprep.subr.mxu0 0.0
  %1095 = vmatpush1.msra.mxu0 0.0
  %1096 = vmatprep.subr.mxu0 0.0
  %1097 = vmatpush1.msra.mxu0 0.0
  %1098 = vmatprep.subr.mxu0 0.0
  %1099 = vmatpush1.msra.mxu0 0.0
  %1100 = vmatprep.subr.mxu0 0.0
  %1101 = vmatpush1.msra.mxu0 0.0
  %1102 = vmatprep.subr.mxu0 0.0
  %1103 = vmatpush1.msra.mxu0 0.0
  %1104 = vmatprep.subr.mxu0 0.0
  %1105 = vmatpush1.msra.mxu0 0.0
  %1106 = vmatprep.subr.mxu0 0.0
  %1107 = vmatpush1.msra.mxu0 0.0
  %1108 = vmatprep.subr.mxu0 0.0
  %1109 = vmatpush1.msra.mxu0 0.0
  %1110 = vmatprep.subr.mxu0 0.0
  %1111 = vmatpush1.msra.mxu0 0.0
  %1112 = vmatprep.subr.mxu0 0.0
  %1113 = vmatpush1.msra.mxu0 0.0
  %1114 = vmatprep.subr.mxu0 0.0
  %1115 = vmatpush1.msra.mxu0 0.0
  %1116 = vmatprep.subr.mxu0 0.0
  %1117 = vmatpush1.msra.mxu0 0.0
  %1118 = vmatprep.subr.mxu0 0.0
  %1119 = vmatpush1.msra.mxu0 0.0
  %1120 = vmatprep.subr.mxu0 0.0
  %1121 = vmatpush1.msra.mxu0 0.0
  %1122 = vmatprep.subr.mxu0 0.0
  %1123 = vmatpush1.msra.mxu0 0.0
  %1124 = vmatprep.subr.mxu0 0.0
  %1125 = vmatpush1.msra.mxu0 0.0
  %1126 = vmatprep.subr.mxu0 0.0
  %1127 = vmatpush1.msra.mxu0 0.0
  %1128 = vmatprep.subr.mxu0 0.0
  %1129 = vmatpush1.msra.mxu0 0.0
  %1130 = vmatprep.subr.mxu0 0.0
  %1131 = vmatpush1.msra.mxu0 0.0
  %1132 = vmatprep.subr.mxu0 0.0
  %1133 = vmatpush1.msra.mxu0 0.0
  %1134 = vmatprep.subr.mxu0 0.0
  %1135 = vmatpush1.msra.mxu0 0.0
  %1136 = vmatprep.subr.mxu0 0.0
  %1137 = vmatpush1.msra.mxu0 0.0
  %1138 = vmatprep.subr.mxu0 0.0
  %1139 = vmatpush1.msra.mxu0 0.0
  %1140 = vmatprep.subr.mxu0 0.0
  %1141 = vmatpush1.msra.mxu0 0.0
  %1142 = vmatprep.subr.mxu0 0.0
  %1143 = vmatpush1.msra.mxu0 0.0
  %1144 = vmatprep.mubr.f32.mxu0 0.0
  %1145 = vmatmul.mubr.f32.gmra.mrb[0].mxu0 %v1078
  %v1146 = vpop.f32.mrb[0].mxu0
  %v1147 = vadd.f32 %v982, %v1146
  %v1148 = vpop.f32.mrb[0].mxu0
  %v1149 = vadd.f32 %v1069, %v1148
  %1150 = vdwg.mxu0
  %1151 = vmatprep.subr.mxu0 %v969
  %1152 = vmatpush1.msra.mxu0 %v968
  %1153 = vmatprep.subr.mxu0 %v977
  %1154 = vmatpush1.msra.mxu0 %v976
  %1155 = vmatprep.subr.mxu0 0.0
  %1156 = vmatpush1.msra.mxu0 0.0
  %1157 = vmatprep.subr.mxu0 0.0
  %1158 = vmatpush1.msra.mxu0 0.0
  %1159 = vmatprep.subr.mxu0 0.0
  %1160 = vmatpush1.msra.mxu0 0.0
  %1161 = vmatprep.subr.mxu0 0.0
  %1162 = vmatpush1.msra.mxu0 0.0
  %1163 = vmatprep.subr.mxu0 0.0
  %1164 = vmatpush1.msra.mxu0 0.0
  %1165 = vmatprep.subr.mxu0 0.0
  %1166 = vmatpush1.msra.mxu0 0.0
  %1167 = vmatprep.subr.mxu0 0.0
  %1168 = vmatpush1.msra.mxu0 0.0
  %1169 = vmatprep.subr.mxu0 0.0
  %1170 = vmatpush1.msra.mxu0 0.0
  %1171 = vmatprep.subr.mxu0 0.0
  %1172 = vmatpush1.msra.mxu0 0.0
  %1173 = vmatprep.subr.mxu0 0.0
  %1174 = vmatpush1.msra.mxu0 0.0
  %1175 = vmatprep.subr.mxu0 0.0
  %1176 = vmatpush1.msra.mxu0 0.0
  %1177 = vmatprep.subr.mxu0 0.0
  %1178 = vmatpush1.msra.mxu0 0.0
  %1179 = vmatprep.subr.mxu0 0.0
  %1180 = vmatpush1.msra.mxu0 0.0
  %1181 = vmatprep.subr.mxu0 0.0
  %1182 = vmatpush1.msra.mxu0 0.0
  %1183 = vmatprep.subr.mxu0 0.0
  %1184 = vmatpush1.msra.mxu0 0.0
  %1185 = vmatprep.subr.mxu0 0.0
  %1186 = vmatpush1.msra.mxu0 0.0
  %1187 = vmatprep.subr.mxu0 0.0
  %1188 = vmatpush1.msra.mxu0 0.0
  %1189 = vmatprep.subr.mxu0 0.0
  %1190 = vmatpush1.msra.mxu0 0.0
  %1191 = vmatprep.subr.mxu0 0.0
  %1192 = vmatpush1.msra.mxu0 0.0
  %1193 = vmatprep.subr.mxu0 0.0
  %1194 = vmatpush1.msra.mxu0 0.0
  %1195 = vmatprep.subr.mxu0 0.0
  %1196 = vmatpush1.msra.mxu0 0.0
  %1197 = vmatprep.subr.mxu0 0.0
  %1198 = vmatpush1.msra.mxu0 0.0
  %1199 = vmatprep.subr.mxu0 0.0
  %1200 = vmatpush1.msra.mxu0 0.0
  %1201 = vmatprep.subr.mxu0 0.0
  %1202 = vmatpush1.msra.mxu0 0.0
  %1203 = vmatprep.subr.mxu0 0.0
  %1204 = vmatpush1.msra.mxu0 0.0
  %1205 = vmatprep.subr.mxu0 0.0
  %1206 = vmatpush1.msra.mxu0 0.0
  %1207 = vmatprep.subr.mxu0 0.0
  %1208 = vmatpush1.msra.mxu0 0.0
  %1209 = vmatprep.subr.mxu0 0.0
  %1210 = vmatpush1.msra.mxu0 0.0
  %1211 = vmatprep.subr.mxu0 0.0
  %1212 = vmatpush1.msra.mxu0 0.0
  %1213 = vmatprep.subr.mxu0 0.0
  %1214 = vmatpush1.msra.mxu0 0.0
  %1215 = vmatprep.mubr.f32.mxu0 0.0
  %1216 = vmatmul.mubr.f32.gmra.mrb[0].mxu0 %v1078
  %v1217 = vpop.f32.mrb[0].mxu0
  %v1218 = vadd.f32 %v983, %v1217
  %v1219 = vpop.f32.mrb[0].mxu0
  %v1220 = vadd.f32 %v1070, %v1219
  %1221 = vdwg.mxu0
  %1222 = vmatprep.subr.mxu0 %v971
  %1223 = vmatpush1.msra.mxu0 %v970
  %1224 = vmatprep.subr.mxu0 %v979
  %1225 = vmatpush1.msra.mxu0 %v978
  %1226 = vmatprep.subr.mxu0 0.0
  %1227 = vmatpush1.msra.mxu0 0.0
  %1228 = vmatprep.subr.mxu0 0.0
  %1229 = vmatpush1.msra.mxu0 0.0
  %1230 = vmatprep.subr.mxu0 0.0
  %1231 = vmatpush1.msra.mxu0 0.0
  %1232 = vmatprep.subr.mxu0 0.0
  %1233 = vmatpush1.msra.mxu0 0.0
  %1234 = vmatprep.subr.mxu0 0.0
  %1235 = vmatpush1.msra.mxu0 0.0
  %1236 = vmatprep.subr.mxu0 0.0
  %1237 = vmatpush1.msra.mxu0 0.0
  %1238 = vmatprep.subr.mxu0 0.0
  %1239 = vmatpush1.msra.mxu0 0.0
  %1240 = vmatprep.subr.mxu0 0.0
  %1241 = vmatpush1.msra.mxu0 0.0
  %1242 = vmatprep.subr.mxu0 0.0
  %1243 = vmatpush1.msra.mxu0 0.0
  %1244 = vmatprep.subr.mxu0 0.0
  %1245 = vmatpush1.msra.mxu0 0.0
  %1246 = vmatprep.subr.mxu0 0.0
  %1247 = vmatpush1.msra.mxu0 0.0
  %1248 = vmatprep.subr.mxu0 0.0
  %1249 = vmatpush1.msra.mxu0 0.0
  %1250 = vmatprep.subr.mxu0 0.0
  %1251 = vmatpush1.msra.mxu0 0.0
  %1252 = vmatprep.subr.mxu0 0.0
  %1253 = vmatpush1.msra.mxu0 0.0
  %1254 = vmatprep.subr.mxu0 0.0
  %1255 = vmatpush1.msra.mxu0 0.0
  %1256 = vmatprep.subr.mxu0 0.0
  %1257 = vmatpush1.msra.mxu0 0.0
  %1258 = vmatprep.subr.mxu0 0.0
  %1259 = vmatpush1.msra.mxu0 0.0
  %1260 = vmatprep.subr.mxu0 0.0
  %1261 = vmatpush1.msra.mxu0 0.0
  %1262 = vmatprep.subr.mxu0 0.0
  %1263 = vmatpush1.msra.mxu0 0.0
  %1264 = vmatprep.subr.mxu0 0.0
  %1265 = vmatpush1.msra.mxu0 0.0
  %1266 = vmatprep.subr.mxu0 0.0
  %1267 = vmatpush1.msra.mxu0 0.0
  %1268 = vmatprep.subr.mxu0 0.0
  %1269 = vmatpush1.msra.mxu0 0.0
  %1270 = vmatprep.subr.mxu0 0.0
  %1271 = vmatpush1.msra.mxu0 0.0
  %1272 = vmatprep.subr.mxu0 0.0
  %1273 = vmatpush1.msra.mxu0 0.0
  %1274 = vmatprep.subr.mxu0 0.0
  %1275 = vmatpush1.msra.mxu0 0.0
  %1276 = vmatprep.subr.mxu0 0.0
  %1277 = vmatpush1.msra.mxu0 0.0
  %1278 = vmatprep.subr.mxu0 0.0
  %1279 = vmatpush1.msra.mxu0 0.0
  %1280 = vmatprep.subr.mxu0 0.0
  %1281 = vmatpush1.msra.mxu0 0.0
  %1282 = vmatprep.subr.mxu0 0.0
  %1283 = vmatpush1.msra.mxu0 0.0
  %1284 = vmatprep.subr.mxu0 0.0
  %1285 = vmatpush1.msra.mxu0 0.0
  %1286 = vmatprep.mubr.f32.mxu0 0.0
  %1287 = vmatmul.mubr.f32.gmra.mrb[0].mxu0 %v1078
  %v1288 = vpop.f32.mrb[0].mxu0
  %v1289 = vadd.f32 %v984, %v1288
  %v1290 = vpop.f32.mrb[0].mxu0
  %v1291 = vadd.f32 %v1071, %v1290
  %1292 = vdwg.mxu0
  %1293 = vmatprep.subr.mxu0 %v973
  %1294 = vmatpush1.msra.mxu0 %v972
  %1295 = vmatprep.subr.mxu0 %v981
  %1296 = vmatpush1.msra.mxu0 %v980
  %1297 = vmatprep.subr.mxu0 0.0
  %1298 = vmatpush1.msra.mxu0 0.0
  %1299 = vmatprep.subr.mxu0 0.0
  %1300 = vmatpush1.msra.mxu0 0.0
  %1301 = vmatprep.subr.mxu0 0.0
  %1302 = vmatpush1.msra.mxu0 0.0
  %1303 = vmatprep.subr.mxu0 0.0
  %1304 = vmatpush1.msra.mxu0 0.0
  %1305 = vmatprep.subr.mxu0 0.0
  %1306 = vmatpush1.msra.mxu0 0.0
  %1307 = vmatprep.subr.mxu0 0.0
  %1308 = vmatpush1.msra.mxu0 0.0
  %1309 = vmatprep.subr.mxu0 0.0
  %1310 = vmatpush1.msra.mxu0 0.0
  %1311 = vmatprep.subr.mxu0 0.0
  %1312 = vmatpush1.msra.mxu0 0.0
  %1313 = vmatprep.subr.mxu0 0.0
  %1314 = vmatpush1.msra.mxu0 0.0
  %1315 = vmatprep.subr.mxu0 0.0
  %1316 = vmatpush1.msra.mxu0 0.0
  %1317 = vmatprep.subr.mxu0 0.0
  %1318 = vmatpush1.msra.mxu0 0.0
  %1319 = vmatprep.subr.mxu0 0.0
  %1320 = vmatpush1.msra.mxu0 0.0
  %1321 = vmatprep.subr.mxu0 0.0
  %1322 = vmatpush1.msra.mxu0 0.0
  %1323 = vmatprep.subr.mxu0 0.0
  %1324 = vmatpush1.msra.mxu0 0.0
  %1325 = vmatprep.subr.mxu0 0.0
  %1326 = vmatpush1.msra.mxu0 0.0
  %1327 = vmatprep.subr.mxu0 0.0
  %1328 = vmatpush1.msra.mxu0 0.0
  %1329 = vmatprep.subr.mxu0 0.0
  %1330 = vmatpush1.msra.mxu0 0.0
  %1331 = vmatprep.subr.mxu0 0.0
  %1332 = vmatpush1.msra.mxu0 0.0
  %1333 = vmatprep.subr.mxu0 0.0
  %1334 = vmatpush1.msra.mxu0 0.0
  %1335 = vmatprep.subr.mxu0 0.0
  %1336 = vmatpush1.msra.mxu0 0.0
  %1337 = vmatprep.subr.mxu0 0.0
  %1338 = vmatpush1.msra.mxu0 0.0
  %1339 = vmatprep.subr.mxu0 0.0
  %1340 = vmatpush1.msra.mxu0 0.0
  %1341 = vmatprep.subr.mxu0 0.0
  %1342 = vmatpush1.msra.mxu0 0.0
  %1343 = vmatprep.subr.mxu0 0.0
  %1344 = vmatpush1.msra.mxu0 0.0
  %1345 = vmatprep.subr.mxu0 0.0
  %1346 = vmatpush1.msra.mxu0 0.0
  %1347 = vmatprep.subr.mxu0 0.0
  %1348 = vmatpush1.msra.mxu0 0.0
  %1349 = vmatprep.subr.mxu0 0.0
  %1350 = vmatpush1.msra.mxu0 0.0
  %1351 = vmatprep.subr.mxu0 0.0
  %1352 = vmatpush1.msra.mxu0 0.0
  %1353 = vmatprep.subr.mxu0 0.0
  %1354 = vmatpush1.msra.mxu0 0.0
  %1355 = vmatprep.subr.mxu0 0.0
  %1356 = vmatpush1.msra.mxu0 0.0
  %1357 = vmatprep.mubr.f32.mxu0 0.0
  %1358 = vmatmul.mubr.f32.gmra.mrb[0].mxu0 %v1078
  %v1359 = vpop.f32.mrb[0].mxu0
  %v1360 = vadd.f32 %v985, %v1359
  %v1361 = vpop.f32.mrb[0].mxu0
  %v1362 = vadd.f32 %v1072, %v1361
  %1363 = vdwg.mxu0
  %v1372 = vcombine.low %v1147, %v1149
  %v1373 = vcombine.low %v1218, %v1220
  %v1374 = vcombine.low %v1289, %v1291
  %v1375 = vcombine.low %v1360, %v1362
  %1380 = vst [vmem:[%s11] sm:$0xff] %v1372
  %1381 = vst [vmem:[%s11 + $0x8] sm:$0xff] %v1373
  %1382 = vst [vmem:[%s11 + $0x10] sm:$0xff] %v1374
  %1383 = vst [vmem:[%s11 + $0x18] sm:$0xff] %v1375
  // Predicated region
  $region46: #{prob_attention_forward.1} parent=0 // pred_check
    _
  $region47: #{prob_attention_forward.1} parent=0 // pred_check_branch
    %1385 = sbr.rel (0) target = $region49
  $region48: #{prob_attention_forward.1} parent=0 // pred_region
    _
  $region49: #{prob_attention_forward.1} parent=0 // pred_fallthru
    _
  // Predicated region
  $region50: #{prob_attention_forward.1} parent=0 // pred_check
    _
  $region51: #{prob_attention_forward.1} parent=0 // pred_check_branch
    %1387 = sbr.rel (0) target = $region53
  $region52: #{prob_attention_forward.1} parent=0 // pred_region
    _
  $region53: #{prob_attention_forward.1} parent=0 // pred_fallthru
    _

</llo_original>
